<compile_context>
chip_gen: v6e
topology: v6e:2x2x1
jax: 0.10.0
libtpu: 0.0.40
codegen_flags: <defaults>
</compile_context>

<pallas_src>
import jax
import jax.numpy as jnp
from jax.experimental import pallas as pl
from jax.experimental.pallas import tpu as pltpu


def _round_up(x: int, m: int) -> int:
    return ((x + m - 1) // m) * m


def _ceil_div(a: int, b: int) -> int:
    return -(-a // b)


def _make_kernel(hidden_dim: int, hpad: int, num_blocks: int, eps: float):
    """Build the fused MLP kernel. All shape constants are closed over (static)."""
    inv_h = 1.0 / float(hidden_dim)

    def layernorm(h, gamma, beta):
        # Padded lanes of h are exactly 0, so lane-sums over hpad equal sums over the
        # real hidden_dim. var = E[h^2] - mean^2 avoids the lane mask entirely and lets
        # the two reductions run independently. Zero-padded gamma/beta keep padded
        # output lanes exactly 0.
        s1 = jnp.sum(h, axis=-1, keepdims=True)
        s2 = jnp.sum(h * h, axis=-1, keepdims=True)
        mean = s1 * inv_h
        var = s2 * inv_h - mean * mean
        inv_std = jax.lax.rsqrt(var + eps)
        return (h - mean) * inv_std * gamma + beta

    def kernel(x_ref, w_in_ref, vec_in_ref, w1_ref, w2_ref, blk_vec_ref,
               w_out_ref, b_out_ref, o_ref):
        vec_in = vec_in_ref[...]                      # (3, hpad): b_in, gamma_in, beta_in

        # Input layer: bf16 operands, f32 MXU accumulation.
        h = jnp.dot(x_ref[...], w_in_ref[...], preferred_element_type=jnp.float32)
        h = h + vec_in[0:1, :]
        h = layernorm(h, vec_in[1:2, :], vec_in[2:3, :])
        h = jnp.maximum(h, 0.0)

        # Residual blocks (num_blocks is tiny and static -> unrolled).
        for i in range(num_blocks):
            bv = blk_vec_ref[i]                       # (6, hpad): b1,g1,bt1,b2,g2,bt2
            identity = h
            t = jnp.dot(h.astype(jnp.bfloat16), w1_ref[i],
                        preferred_element_type=jnp.float32) + bv[0:1, :]
            t = layernorm(t, bv[1:2, :], bv[2:3, :])
            t = jnp.maximum(t, 0.0)
            t = jnp.dot(t.astype(jnp.bfloat16), w2_ref[i],
                        preferred_element_type=jnp.float32) + bv[3:4, :]
            t = layernorm(t, bv[4:5, :], bv[5:6, :])
            h = jnp.maximum(t + identity, 0.0)
            # TODO(synk): nn.Dropout(p=0.1) is identity in eval/inference mode; training-mode
            # stochastic dropout (pltpu.prng_seed/prng_random_bits) intentionally omitted.

        # Classifier head into a lane-dense (tb, 128) slab (real classes sliced in wrapper).
        o_ref[...] = (jnp.dot(h.astype(jnp.bfloat16), w_out_ref[...],
                              preferred_element_type=jnp.float32) + b_out_ref[...])

    return kernel


def mlp_classifier_deep_residual_forward(x, params, *, eps: float = 1e-5, interpret: bool = False):
    """
    Args:
      x:      (b, 3, H, W) float32 image batch (NCHW, like PyTorch)
      params: dict of unpadded f32 parameters (see init_params); Linear weights transposed
              to (in_features, out_features).
    Returns:
      (b, num_classes) float32 logits
    """
    b = x.shape[0]
    d = x.shape[1] * x.shape[2] * x.shape[3]
    hidden = params["w_in"].shape[1]
    num_classes = params["w_out"].shape[1]
    num_blocks = params["w1"].shape[0]

    hpad = _round_up(hidden, 128)          # lane-dense hidden width
    cpad = _round_up(num_classes, 128)     # lane-dense output width

    # --- batch tiling: big tiles to amortize per-step overhead; >=2 (even) tiles for
    #     mid/large batches so the "parallel" axis can shard across v7x's two TCs. ---
    if b <= 256:
        tb = _round_up(b, 16)              # bf16 x tile packs 16 rows/sublane
    else:
        n_target = max(2, _ceil_div(b, 512))
        if n_target % 2:
            n_target += 1
        tb = _round_up(_ceil_div(b, n_target), 16)
    b_pad = _round_up(b, tb)
    n_tiles = b_pad // tb

    # --- wrapper-side glue: flatten like torch, cast to bf16 BEFORE padding (single pass),
    #     skip the pad entirely when already aligned. ---
    x_flat = x.reshape(b, d).astype(jnp.bfloat16)
    if b_pad != b:
        x_flat = jnp.pad(x_flat, ((0, b_pad - b), (0, 0)))

    def pad_mat(w, rows, cols, dtype):
        w = w.astype(jnp.float32)
        return jnp.pad(w, ((0, rows - w.shape[0]), (0, cols - w.shape[1]))).astype(dtype)

    def pad_vec(v, cols):
        v = v.astype(jnp.float32)
        return jnp.pad(v, (0, cols - v.shape[0]))

    def pad_stack_mat(w):   # (NB, hid, hid) -> (NB, hpad, hpad) bf16
        w = w.astype(jnp.float32)
        w = jnp.pad(w, ((0, 0), (0, hpad - w.shape[1]), (0, hpad - w.shape[2])))
        return w.astype(jnp.bfloat16)

    def pad_stack_vec(v):   # (NB, hid) -> (NB, hpad) f32
        v = v.astype(jnp.float32)
        return jnp.pad(v, ((0, 0), (0, hpad - v.shape[1])))

    w_in = pad_mat(params["w_in"], d, hpad, jnp.bfloat16)           # bf16 MXU operand
    vec_in = jnp.stack([pad_vec(params["b_in"], hpad),
                        pad_vec(params["g_in"], hpad),
                        pad_vec(params["bt_in"], hpad)], axis=0)     # (3, hpad) f32

    w1 = pad_stack_mat(params["w1"])                                 # (NB, hpad, hpad) bf16
    w2 = pad_stack_mat(params["w2"])                                 # (NB, hpad, hpad) bf16
    blk_vec = jnp.stack([pad_stack_vec(params["b1"]),
                         pad_stack_vec(params["g1"]),
                         pad_stack_vec(params["bt1"]),
                         pad_stack_vec(params["b2"]),
                         pad_stack_vec(params["g2"]),
                         pad_stack_vec(params["bt2"])], axis=1)      # (NB, 6, hpad) f32

    w_out = pad_mat(params["w_out"], hpad, cpad, jnp.bfloat16)       # (hpad, cpad) bf16
    b_out = pad_vec(params["b_out"], cpad).reshape(1, cpad)          # (1, cpad) f32

    kernel = _make_kernel(hidden, hpad, num_blocks, eps)

    # W_in residency guard: on v7x (64 MiB VMEM) a huge d could not afford two buffers of
    # the constant-index weight; fall back to single-buffering in that case.
    def _nbytes(a):
        return a.size * a.dtype.itemsize
    if 2 * _nbytes(w_in) > (24 << 20):
        w_in_spec = pl.BlockSpec((d, hpad), lambda i: (0, 0), pipeline_mode=pl.Buffered(1))
        w_in_bufs = 1
    else:
        w_in_spec = pl.BlockSpec((d, hpad), lambda i: (0, 0))
        w_in_bufs = 2

    in_specs = [
        pl.BlockSpec((tb, d), lambda i: (i, 0)),                        # x (batch tiled)
        w_in_spec,                                                      # W_in (resident)
        pl.BlockSpec((3, hpad), lambda i: (0, 0)),                      # b_in/gamma/beta pack
        pl.BlockSpec((num_blocks, hpad, hpad), lambda i: (0, 0, 0)),    # W1 stack
        pl.BlockSpec((num_blocks, hpad, hpad), lambda i: (0, 0, 0)),    # W2 stack
        pl.BlockSpec((num_blocks, 6, hpad), lambda i: (0, 0, 0)),       # block bias/LN pack
        pl.BlockSpec((hpad, cpad), lambda i: (0, 0)),                   # W_out
        pl.BlockSpec((1, cpad), lambda i: (0, 0)),                      # b_out
    ]
    out_specs = pl.BlockSpec((tb, cpad), lambda i: (i, 0))

    # VMEM budget sized from the actual buffers (x/out tiles double-buffered, weights
    # resident), with 2x headroom; clamped to stay under every generation's physical VMEM.
    resident_bytes = (_nbytes(vec_in) + _nbytes(w1) + _nbytes(w2) + _nbytes(blk_vec)
                      + _nbytes(w_out) + _nbytes(b_out))
    vmem_est = (2 * tb * d * 2                      # x tile (bf16), double-buffered
                + w_in_bufs * _nbytes(w_in)
                + 2 * resident_bytes
                + 2 * tb * cpad * 4                 # output tile, double-buffered
                + 8 * tb * hpad * 4)                # activation / temporaries headroom
    vmem_limit = int(min(max(2 * vmem_est, 32 << 20), 96 << 20))

    flops = (2 * b_pad * d * hpad
             + num_blocks * 2 * (2 * b_pad * hpad * hpad)
             + 2 * b_pad * hpad * cpad)
    transcendentals = b_pad * (1 + 2 * num_blocks)          # one rsqrt per row per LayerNorm
    bytes_accessed = (_nbytes(x_flat) + _nbytes(w_in) + _nbytes(vec_in)
                      + _nbytes(w1) + _nbytes(w2) + _nbytes(blk_vec)
                      + _nbytes(w_out) + _nbytes(b_out)
                      + 4 * b_pad * cpad)

    out = pl.pallas_call(
        kernel,
        out_shape=jax.ShapeDtypeStruct((b_pad, cpad), jnp.float32),
        grid=(n_tiles,),
        in_specs=in_specs,
        out_specs=out_specs,
        compiler_params=pltpu.CompilerParams(
            dimension_semantics=("parallel",),
            vmem_limit_bytes=vmem_limit),
        cost_estimate=pl.CostEstimate(flops=flops,
                                      transcendentals=transcendentals,
                                      bytes_accessed=bytes_accessed),
        interpret=interpret,
    )(x_flat, w_in, vec_in, w1, w2, blk_vec, w_out, b_out)

    # Padded batch rows ran LayerNorm on constant rows -> rsqrt(0+eps) produces large but
    # finite garbage; it is intentionally sliced off here (not a bug).
    return out[:b, :num_classes]


def init_params(key, input_dim, hidden_dim, num_classes, num_blocks):
    """Deterministic init: Linear ~ torch default U(+-1/sqrt(fan_in)); LN affine randomized
    slightly around (1, 0) to exercise the affine path."""
    def linear_init(k, fan_in, fan_out):
        kw, kb = jax.random.split(k)
        bound = 1.0 / (fan_in ** 0.5)
        w = jax.random.uniform(kw, (fan_in, fan_out), jnp.float32, minval=-bound, maxval=bound)
        bb = jax.random.uniform(kb, (fan_out,), jnp.float32, minval=-bound, maxval=bound)
        return w, bb

    k_in, k_out, k_blk, k_ln = jax.random.split(key, 4)
    w_in, b_in = linear_init(k_in, input_dim, hidden_dim)
    w_out, b_out = linear_init(k_out, hidden_dim, num_classes)

    w1s, b1s, w2s, b2s = [], [], [], []
    for bk in jax.random.split(k_blk, num_blocks):
        k1, k2 = jax.random.split(bk)
        w1, b1 = linear_init(k1, hidden_dim, hidden_dim)
        w2, b2 = linear_init(k2, hidden_dim, hidden_dim)
        w1s.append(w1); b1s.append(b1); w2s.append(w2); b2s.append(b2)

    ln_keys = jax.random.split(k_ln, 6)
    return {
        "w_in": w_in, "b_in": b_in,
        "g_in": 1.0 + 0.1 * jax.random.normal(ln_keys[0], (hidden_dim,), jnp.float32),
        "bt_in": 0.1 * jax.random.normal(ln_keys[1], (hidden_dim,), jnp.float32),
        "w1": jnp.stack(w1s), "b1": jnp.stack(b1s),
        "g1": 1.0 + 0.1 * jax.random.normal(ln_keys[2], (num_blocks, hidden_dim), jnp.float32),
        "bt1": 0.1 * jax.random.normal(ln_keys[3], (num_blocks, hidden_dim), jnp.float32),
        "w2": jnp.stack(w2s), "b2": jnp.stack(b2s),
        "g2": 1.0 + 0.1 * jax.random.normal(ln_keys[4], (num_blocks, hidden_dim), jnp.float32),
        "bt2": 0.1 * jax.random.normal(ln_keys[5], (num_blocks, hidden_dim), jnp.float32),
        "w_out": w_out, "b_out": b_out,
    }


def reference_forward(x, params, eps=1e-5, bf16_matmuls=True):
    """Pure-JAX reference matching the PyTorch module's eval-mode forward.
    bf16_matmuls=True mirrors the kernel's numerics (bf16 operands, f32 accumulation)."""
    b = x.shape[0]
    xf = x.reshape(b, -1).astype(jnp.float32)

    def mm(a, w):
        if bf16_matmuls:
            return jnp.dot(a.astype(jnp.bfloat16), w.astype(jnp.bfloat16),
                           preferred_element_type=jnp.float32)
        return jnp.dot(a, w, preferred_element_type=jnp.float32)

    def ln(h, g, bt):
        mean = jnp.mean(h, axis=-1, keepdims=True)
        var = jnp.mean((h - mean) ** 2, axis=-1, keepdims=True)
        return (h - mean) * jax.lax.rsqrt(var + eps) * g + bt

    h = mm(xf, params["w_in"]) + params["b_in"]
    h = jnp.maximum(ln(h, params["g_in"], params["bt_in"]), 0.0)

    for i in range(params["w1"].shape[0]):
        identity = h
        t = mm(h, params["w1"][i]) + params["b1"][i]
        t = jnp.maximum(ln(t, params["g1"][i], params["bt1"][i]), 0.0)
        t = mm(t, params["w2"][i]) + params["b2"][i]
        t = ln(t, params["g2"][i], params["bt2"][i])
        h = jnp.maximum(t + identity, 0.0)

    return mm(h, params["w_out"]) + params["b_out"]


if __name__ == "__main__":
    # Small shapes consistent with the module's forward: (b, 3, H, W), hidden=32, 5 blocks.
    B, C_IN, H_IMG, W_IMG = 2, 3, 16, 16
    NUM_CLASSES, HIDDEN, NUM_BLOCKS = 6, 32, 5
    D = C_IN * H_IMG * W_IMG

    key = jax.random.PRNGKey(0)
    kx, kp = jax.random.split(key)
    x = jax.random.normal(kx, (B, C_IN, H_IMG, W_IMG), dtype=jnp.float32)
    params = init_params(kp, D, HIDDEN, NUM_CLASSES, NUM_BLOCKS)

    logits = mlp_classifier_deep_residual_forward(x, params)
    logits = jax.block_until_ready(logits)
    assert logits.shape == (B, NUM_CLASSES)

    # Tight check vs a reference that mirrors the kernel's numerics (bf16 matmuls).
    ref_mirror = reference_forward(x, params, bf16_matmuls=True)
    assert jnp.allclose(logits, ref_mirror, atol=2e-3, rtol=2e-3), (
        f"max diff vs mirrored ref: {float(jnp.max(jnp.abs(logits - ref_mirror)))}")
    # Loose check vs the pure-f32 reference (bf16 matmul error bound).
    ref_f32 = reference_forward(x, params, bf16_matmuls=False)
    assert float(jnp.max(jnp.abs(logits - ref_f32))) < 2e-1

    print("KERNEL_OK")
</pallas_src>

<mosaic_0001>
module attributes {stable_mosaic.version = 11 : i64} {
  func.func @kernel(%arg0: i32, %arg1: memref<16x768xbf16, #tpu.memory_space<vmem>>, %arg2: memref<768x128xbf16, #tpu.memory_space<vmem>>, %arg3: memref<3x128xf32, #tpu.memory_space<vmem>>, %arg4: memref<5x128x128xbf16, #tpu.memory_space<vmem>>, %arg5: memref<5x128x128xbf16, #tpu.memory_space<vmem>>, %arg6: memref<5x6x128xf32, #tpu.memory_space<vmem>>, %arg7: memref<128x128xbf16, #tpu.memory_space<vmem>>, %arg8: memref<1x128xf32, #tpu.memory_space<vmem>>, %arg9: memref<16x128xf32, #tpu.memory_space<vmem>>) attributes {dimension_semantics = [#tpu.dimension_semantics<parallel>], iteration_bounds = array<i64: 1>, scalar_prefetch = 0 : i64, scratch_operands = 0 : i64, tpu.core_type = #tpu.core_type<tc>, window_params = [{transform_indices = @transform_0, window_bounds = array<i64: 16, 768>}, {pipeline_mode = #tpu.pipeline_mode<synchronous>, transform_indices = @transform_1, window_bounds = array<i64: 768, 128>}, {pipeline_mode = #tpu.pipeline_mode<synchronous>, transform_indices = @transform_2, window_bounds = array<i64: 3, 128>}, {pipeline_mode = #tpu.pipeline_mode<synchronous>, transform_indices = @transform_3, window_bounds = array<i64: 5, 128, 128>}, {pipeline_mode = #tpu.pipeline_mode<synchronous>, transform_indices = @transform_4, window_bounds = array<i64: 5, 128, 128>}, {pipeline_mode = #tpu.pipeline_mode<synchronous>, transform_indices = @transform_5, window_bounds = array<i64: 5, 6, 128>}, {pipeline_mode = #tpu.pipeline_mode<synchronous>, transform_indices = @transform_6, window_bounds = array<i64: 128, 128>}, {pipeline_mode = #tpu.pipeline_mode<synchronous>, transform_indices = @transform_7, window_bounds = array<i64: 1, 128>}, {transform_indices = @transform_8, window_bounds = array<i64: 16, 128>}]} {
    %c0 = arith.constant 0 : index
    %c0_0 = arith.constant 0 : index
    %0 = vector.load %arg3[%c0, %c0_0] : memref<3x128xf32, #tpu.memory_space<vmem>>, vector<3x128xf32>
    %c0_1 = arith.constant 0 : index
    %c0_2 = arith.constant 0 : index
    %1 = vector.load %arg1[%c0_1, %c0_2] : memref<16x768xbf16, #tpu.memory_space<vmem>>, vector<16x768xbf16>
    %c0_3 = arith.constant 0 : index
    %c0_4 = arith.constant 0 : index
    %2 = vector.load %arg2[%c0_3, %c0_4] : memref<768x128xbf16, #tpu.memory_space<vmem>>, vector<768x128xbf16>
    %cst = arith.constant dense<0.000000e+00> : vector<16x128xf32>
    %3 = tpu.matmul %1, %2, %cst {dimension_numbers = #tpu.dot_dimension_numbers<[1], [0], [0], [1], [0, 0, 1, 1], [], []>} : vector<16x768xbf16>, vector<768x128xbf16>, vector<16x128xf32> -> vector<16x128xf32>
    %4 = vector.extract_strided_slice %0 {offsets = [0, 0], sizes = [1, 128], strides = [1, 1]} : vector<3x128xf32> to vector<1x128xf32>
    %5 = vector.broadcast %4 : vector<1x128xf32> to vector<16x128xf32>
    %6 = arith.addf %3, %5 : vector<16x128xf32>
    %7 = vector.extract_strided_slice %0 {offsets = [1, 0], sizes = [1, 128], strides = [1, 1]} : vector<3x128xf32> to vector<1x128xf32>
    %8 = vector.extract_strided_slice %0 {offsets = [2, 0], sizes = [1, 128], strides = [1, 1]} : vector<3x128xf32> to vector<1x128xf32>
    %cst_5 = arith.constant dense<0.000000e+00> : vector<16xf32>
    %9 = vector.multi_reduction <add>, %6, %cst_5 [1] : vector<16x128xf32> to vector<16xf32>
    %10 = vector.shape_cast %9 : vector<16xf32> to vector<16x1xf32>
    %11 = arith.mulf %6, %6 : vector<16x128xf32>
    %cst_6 = arith.constant dense<0.000000e+00> : vector<16xf32>
    %12 = vector.multi_reduction <add>, %11, %cst_6 [1] : vector<16x128xf32> to vector<16xf32>
    %13 = vector.shape_cast %12 : vector<16xf32> to vector<16x1xf32>
    %cst_7 = arith.constant 3.125000e-02 : f32
    %14 = vector.broadcast %cst_7 : f32 to vector<16x1xf32>
    %15 = arith.mulf %10, %14 : vector<16x1xf32>
    %cst_8 = arith.constant 3.125000e-02 : f32
    %16 = vector.broadcast %cst_8 : f32 to vector<16x1xf32>
    %17 = arith.mulf %13, %16 : vector<16x1xf32>
    %18 = arith.mulf %15, %15 : vector<16x1xf32>
    %19 = arith.subf %17, %18 : vector<16x1xf32>
    %cst_9 = arith.constant 9.99999974E-6 : f32
    %20 = vector.broadcast %cst_9 : f32 to vector<16x1xf32>
    %21 = arith.addf %19, %20 : vector<16x1xf32>
    %22 = math.rsqrt %21 : vector<16x1xf32>
    %23 = vector.broadcast %15 : vector<16x1xf32> to vector<16x128xf32>
    %24 = arith.subf %6, %23 : vector<16x128xf32>
    %25 = vector.broadcast %22 : vector<16x1xf32> to vector<16x128xf32>
    %26 = arith.mulf %24, %25 : vector<16x128xf32>
    %27 = vector.broadcast %7 : vector<1x128xf32> to vector<16x128xf32>
    %28 = arith.mulf %26, %27 : vector<16x128xf32>
    %29 = vector.broadcast %8 : vector<1x128xf32> to vector<16x128xf32>
    %30 = arith.addf %28, %29 : vector<16x128xf32>
    %cst_10 = arith.constant 0.000000e+00 : f32
    %31 = vector.broadcast %cst_10 : f32 to vector<16x128xf32>
    %32 = arith.maximumf %30, %31 : vector<16x128xf32>
    %c0_11 = arith.constant 0 : index
    %c0_12 = arith.constant 0 : index
    %c0_13 = arith.constant 0 : index
    %33 = vector.load %arg6[%c0_11, %c0_12, %c0_13] : memref<5x6x128xf32, #tpu.memory_space<vmem>>, vector<1x6x128xf32>
    %34 = vector.shape_cast %33 : vector<1x6x128xf32> to vector<6x128xf32>
    %35 = arith.truncf %32 : vector<16x128xf32> to vector<16x128xbf16>
    %c0_14 = arith.constant 0 : index
    %c0_15 = arith.constant 0 : index
    %c0_16 = arith.constant 0 : index
    %36 = vector.load %arg4[%c0_14, %c0_15, %c0_16] : memref<5x128x128xbf16, #tpu.memory_space<vmem>>, vector<1x128x128xbf16>
    %37 = vector.shape_cast %36 : vector<1x128x128xbf16> to vector<128x128xbf16>
    %cst_17 = arith.constant dense<0.000000e+00> : vector<16x128xf32>
    %38 = tpu.matmul %35, %37, %cst_17 {dimension_numbers = #tpu.dot_dimension_numbers<[1], [0], [0], [1], [0, 0, 1, 1], [], []>} : vector<16x128xbf16>, vector<128x128xbf16>, vector<16x128xf32> -> vector<16x128xf32>
    %39 = vector.extract_strided_slice %34 {offsets = [0, 0], sizes = [1, 128], strides = [1, 1]} : vector<6x128xf32> to vector<1x128xf32>
    %40 = vector.broadcast %39 : vector<1x128xf32> to vector<16x128xf32>
    %41 = arith.addf %38, %40 : vector<16x128xf32>
    %42 = vector.extract_strided_slice %34 {offsets = [1, 0], sizes = [1, 128], strides = [1, 1]} : vector<6x128xf32> to vector<1x128xf32>
    %43 = vector.extract_strided_slice %34 {offsets = [2, 0], sizes = [1, 128], strides = [1, 1]} : vector<6x128xf32> to vector<1x128xf32>
    %cst_18 = arith.constant dense<0.000000e+00> : vector<16xf32>
    %44 = vector.multi_reduction <add>, %41, %cst_18 [1] : vector<16x128xf32> to vector<16xf32>
    %45 = vector.shape_cast %44 : vector<16xf32> to vector<16x1xf32>
    %46 = arith.mulf %41, %41 : vector<16x128xf32>
    %cst_19 = arith.constant dense<0.000000e+00> : vector<16xf32>
    %47 = vector.multi_reduction <add>, %46, %cst_19 [1] : vector<16x128xf32> to vector<16xf32>
    %48 = vector.shape_cast %47 : vector<16xf32> to vector<16x1xf32>
    %cst_20 = arith.constant 3.125000e-02 : f32
    %49 = vector.broadcast %cst_20 : f32 to vector<16x1xf32>
    %50 = arith.mulf %45, %49 : vector<16x1xf32>
    %cst_21 = arith.constant 3.125000e-02 : f32
    %51 = vector.broadcast %cst_21 : f32 to vector<16x1xf32>
    %52 = arith.mulf %48, %51 : vector<16x1xf32>
    %53 = arith.mulf %50, %50 : vector<16x1xf32>
    %54 = arith.subf %52, %53 : vector<16x1xf32>
    %cst_22 = arith.constant 9.99999974E-6 : f32
    %55 = vector.broadcast %cst_22 : f32 to vector<16x1xf32>
    %56 = arith.addf %54, %55 : vector<16x1xf32>
    %57 = math.rsqrt %56 : vector<16x1xf32>
    %58 = vector.broadcast %50 : vector<16x1xf32> to vector<16x128xf32>
    %59 = arith.subf %41, %58 : vector<16x128xf32>
    %60 = vector.broadcast %57 : vector<16x1xf32> to vector<16x128xf32>
    %61 = arith.mulf %59, %60 : vector<16x128xf32>
    %62 = vector.broadcast %42 : vector<1x128xf32> to vector<16x128xf32>
    %63 = arith.mulf %61, %62 : vector<16x128xf32>
    %64 = vector.broadcast %43 : vector<1x128xf32> to vector<16x128xf32>
    %65 = arith.addf %63, %64 : vector<16x128xf32>
    %cst_23 = arith.constant 0.000000e+00 : f32
    %66 = vector.broadcast %cst_23 : f32 to vector<16x128xf32>
    %67 = arith.maximumf %65, %66 : vector<16x128xf32>
    %68 = arith.truncf %67 : vector<16x128xf32> to vector<16x128xbf16>
    %c0_24 = arith.constant 0 : index
    %c0_25 = arith.constant 0 : index
    %c0_26 = arith.constant 0 : index
    %69 = vector.load %arg5[%c0_24, %c0_25, %c0_26] : memref<5x128x128xbf16, #tpu.memory_space<vmem>>, vector<1x128x128xbf16>
    %70 = vector.shape_cast %69 : vector<1x128x128xbf16> to vector<128x128xbf16>
    %cst_27 = arith.constant dense<0.000000e+00> : vector<16x128xf32>
    %71 = tpu.matmul %68, %70, %cst_27 {dimension_numbers = #tpu.dot_dimension_numbers<[1], [0], [0], [1], [0, 0, 1, 1], [], []>} : vector<16x128xbf16>, vector<128x128xbf16>, vector<16x128xf32> -> vector<16x128xf32>
    %72 = vector.extract_strided_slice %34 {offsets = [3, 0], sizes = [1, 128], strides = [1, 1]} : vector<6x128xf32> to vector<1x128xf32>
    %73 = vector.broadcast %72 : vector<1x128xf32> to vector<16x128xf32>
    %74 = arith.addf %71, %73 : vector<16x128xf32>
    %75 = vector.extract_strided_slice %34 {offsets = [4, 0], sizes = [1, 128], strides = [1, 1]} : vector<6x128xf32> to vector<1x128xf32>
    %76 = vector.extract_strided_slice %34 {offsets = [5, 0], sizes = [1, 128], strides = [1, 1]} : vector<6x128xf32> to vector<1x128xf32>
    %cst_28 = arith.constant dense<0.000000e+00> : vector<16xf32>
    %77 = vector.multi_reduction <add>, %74, %cst_28 [1] : vector<16x128xf32> to vector<16xf32>
    %78 = vector.shape_cast %77 : vector<16xf32> to vector<16x1xf32>
    %79 = arith.mulf %74, %74 : vector<16x128xf32>
    %cst_29 = arith.constant dense<0.000000e+00> : vector<16xf32>
    %80 = vector.multi_reduction <add>, %79, %cst_29 [1] : vector<16x128xf32> to vector<16xf32>
    %81 = vector.shape_cast %80 : vector<16xf32> to vector<16x1xf32>
    %cst_30 = arith.constant 3.125000e-02 : f32
    %82 = vector.broadcast %cst_30 : f32 to vector<16x1xf32>
    %83 = arith.mulf %78, %82 : vector<16x1xf32>
    %cst_31 = arith.constant 3.125000e-02 : f32
    %84 = vector.broadcast %cst_31 : f32 to vector<16x1xf32>
    %85 = arith.mulf %81, %84 : vector<16x1xf32>
    %86 = arith.mulf %83, %83 : vector<16x1xf32>
    %87 = arith.subf %85, %86 : vector<16x1xf32>
    %cst_32 = arith.constant 9.99999974E-6 : f32
    %88 = vector.broadcast %cst_32 : f32 to vector<16x1xf32>
    %89 = arith.addf %87, %88 : vector<16x1xf32>
    %90 = math.rsqrt %89 : vector<16x1xf32>
    %91 = vector.broadcast %83 : vector<16x1xf32> to vector<16x128xf32>
    %92 = arith.subf %74, %91 : vector<16x128xf32>
    %93 = vector.broadcast %90 : vector<16x1xf32> to vector<16x128xf32>
    %94 = arith.mulf %92, %93 : vector<16x128xf32>
    %95 = vector.broadcast %75 : vector<1x128xf32> to vector<16x128xf32>
    %96 = arith.mulf %94, %95 : vector<16x128xf32>
    %97 = vector.broadcast %76 : vector<1x128xf32> to vector<16x128xf32>
    %98 = arith.addf %96, %97 : vector<16x128xf32>
    %99 = arith.addf %98, %32 : vector<16x128xf32>
    %cst_33 = arith.constant 0.000000e+00 : f32
    %100 = vector.broadcast %cst_33 : f32 to vector<16x128xf32>
    %101 = arith.maximumf %99, %100 : vector<16x128xf32>
    %c1 = arith.constant 1 : index
    %c0_34 = arith.constant 0 : index
    %c0_35 = arith.constant 0 : index
    %102 = vector.load %arg6[%c1, %c0_34, %c0_35] : memref<5x6x128xf32, #tpu.memory_space<vmem>>, vector<1x6x128xf32>
    %103 = vector.shape_cast %102 : vector<1x6x128xf32> to vector<6x128xf32>
    %104 = arith.truncf %101 : vector<16x128xf32> to vector<16x128xbf16>
    %c1_36 = arith.constant 1 : index
    %c0_37 = arith.constant 0 : index
    %c0_38 = arith.constant 0 : index
    %105 = vector.load %arg4[%c1_36, %c0_37, %c0_38] : memref<5x128x128xbf16, #tpu.memory_space<vmem>>, vector<1x128x128xbf16>
    %106 = vector.shape_cast %105 : vector<1x128x128xbf16> to vector<128x128xbf16>
    %cst_39 = arith.constant dense<0.000000e+00> : vector<16x128xf32>
    %107 = tpu.matmul %104, %106, %cst_39 {dimension_numbers = #tpu.dot_dimension_numbers<[1], [0], [0], [1], [0, 0, 1, 1], [], []>} : vector<16x128xbf16>, vector<128x128xbf16>, vector<16x128xf32> -> vector<16x128xf32>
    %108 = vector.extract_strided_slice %103 {offsets = [0, 0], sizes = [1, 128], strides = [1, 1]} : vector<6x128xf32> to vector<1x128xf32>
    %109 = vector.broadcast %108 : vector<1x128xf32> to vector<16x128xf32>
    %110 = arith.addf %107, %109 : vector<16x128xf32>
    %111 = vector.extract_strided_slice %103 {offsets = [1, 0], sizes = [1, 128], strides = [1, 1]} : vector<6x128xf32> to vector<1x128xf32>
    %112 = vector.extract_strided_slice %103 {offsets = [2, 0], sizes = [1, 128], strides = [1, 1]} : vector<6x128xf32> to vector<1x128xf32>
    %cst_40 = arith.constant dense<0.000000e+00> : vector<16xf32>
    %113 = vector.multi_reduction <add>, %110, %cst_40 [1] : vector<16x128xf32> to vector<16xf32>
    %114 = vector.shape_cast %113 : vector<16xf32> to vector<16x1xf32>
    %115 = arith.mulf %110, %110 : vector<16x128xf32>
    %cst_41 = arith.constant dense<0.000000e+00> : vector<16xf32>
    %116 = vector.multi_reduction <add>, %115, %cst_41 [1] : vector<16x128xf32> to vector<16xf32>
    %117 = vector.shape_cast %116 : vector<16xf32> to vector<16x1xf32>
    %cst_42 = arith.constant 3.125000e-02 : f32
    %118 = vector.broadcast %cst_42 : f32 to vector<16x1xf32>
    %119 = arith.mulf %114, %118 : vector<16x1xf32>
    %cst_43 = arith.constant 3.125000e-02 : f32
    %120 = vector.broadcast %cst_43 : f32 to vector<16x1xf32>
    %121 = arith.mulf %117, %120 : vector<16x1xf32>
    %122 = arith.mulf %119, %119 : vector<16x1xf32>
    %123 = arith.subf %121, %122 : vector<16x1xf32>
    %cst_44 = arith.constant 9.99999974E-6 : f32
    %124 = vector.broadcast %cst_44 : f32 to vector<16x1xf32>
    %125 = arith.addf %123, %124 : vector<16x1xf32>
    %126 = math.rsqrt %125 : vector<16x1xf32>
    %127 = vector.broadcast %119 : vector<16x1xf32> to vector<16x128xf32>
    %128 = arith.subf %110, %127 : vector<16x128xf32>
    %129 = vector.broadcast %126 : vector<16x1xf32> to vector<16x128xf32>
    %130 = arith.mulf %128, %129 : vector<16x128xf32>
    %131 = vector.broadcast %111 : vector<1x128xf32> to vector<16x128xf32>
    %132 = arith.mulf %130, %131 : vector<16x128xf32>
    %133 = vector.broadcast %112 : vector<1x128xf32> to vector<16x128xf32>
    %134 = arith.addf %132, %133 : vector<16x128xf32>
    %cst_45 = arith.constant 0.000000e+00 : f32
    %135 = vector.broadcast %cst_45 : f32 to vector<16x128xf32>
    %136 = arith.maximumf %134, %135 : vector<16x128xf32>
    %137 = arith.truncf %136 : vector<16x128xf32> to vector<16x128xbf16>
    %c1_46 = arith.constant 1 : index
    %c0_47 = arith.constant 0 : index
    %c0_48 = arith.constant 0 : index
    %138 = vector.load %arg5[%c1_46, %c0_47, %c0_48] : memref<5x128x128xbf16, #tpu.memory_space<vmem>>, vector<1x128x128xbf16>
    %139 = vector.shape_cast %138 : vector<1x128x128xbf16> to vector<128x128xbf16>
    %cst_49 = arith.constant dense<0.000000e+00> : vector<16x128xf32>
    %140 = tpu.matmul %137, %139, %cst_49 {dimension_numbers = #tpu.dot_dimension_numbers<[1], [0], [0], [1], [0, 0, 1, 1], [], []>} : vector<16x128xbf16>, vector<128x128xbf16>, vector<16x128xf32> -> vector<16x128xf32>
    %141 = vector.extract_strided_slice %103 {offsets = [3, 0], sizes = [1, 128], strides = [1, 1]} : vector<6x128xf32> to vector<1x128xf32>
    %142 = vector.broadcast %141 : vector<1x128xf32> to vector<16x128xf32>
    %143 = arith.addf %140, %142 : vector<16x128xf32>
    %144 = vector.extract_strided_slice %103 {offsets = [4, 0], sizes = [1, 128], strides = [1, 1]} : vector<6x128xf32> to vector<1x128xf32>
    %145 = vector.extract_strided_slice %103 {offsets = [5, 0], sizes = [1, 128], strides = [1, 1]} : vector<6x128xf32> to vector<1x128xf32>
    %cst_50 = arith.constant dense<0.000000e+00> : vector<16xf32>
    %146 = vector.multi_reduction <add>, %143, %cst_50 [1] : vector<16x128xf32> to vector<16xf32>
    %147 = vector.shape_cast %146 : vector<16xf32> to vector<16x1xf32>
    %148 = arith.mulf %143, %143 : vector<16x128xf32>
    %cst_51 = arith.constant dense<0.000000e+00> : vector<16xf32>
    %149 = vector.multi_reduction <add>, %148, %cst_51 [1] : vector<16x128xf32> to vector<16xf32>
    %150 = vector.shape_cast %149 : vector<16xf32> to vector<16x1xf32>
    %cst_52 = arith.constant 3.125000e-02 : f32
    %151 = vector.broadcast %cst_52 : f32 to vector<16x1xf32>
    %152 = arith.mulf %147, %151 : vector<16x1xf32>
    %cst_53 = arith.constant 3.125000e-02 : f32
    %153 = vector.broadcast %cst_53 : f32 to vector<16x1xf32>
    %154 = arith.mulf %150, %153 : vector<16x1xf32>
    %155 = arith.mulf %152, %152 : vector<16x1xf32>
    %156 = arith.subf %154, %155 : vector<16x1xf32>
    %cst_54 = arith.constant 9.99999974E-6 : f32
    %157 = vector.broadcast %cst_54 : f32 to vector<16x1xf32>
    %158 = arith.addf %156, %157 : vector<16x1xf32>
    %159 = math.rsqrt %158 : vector<16x1xf32>
    %160 = vector.broadcast %152 : vector<16x1xf32> to vector<16x128xf32>
    %161 = arith.subf %143, %160 : vector<16x128xf32>
    %162 = vector.broadcast %159 : vector<16x1xf32> to vector<16x128xf32>
    %163 = arith.mulf %161, %162 : vector<16x128xf32>
    %164 = vector.broadcast %144 : vector<1x128xf32> to vector<16x128xf32>
    %165 = arith.mulf %163, %164 : vector<16x128xf32>
    %166 = vector.broadcast %145 : vector<1x128xf32> to vector<16x128xf32>
    %167 = arith.addf %165, %166 : vector<16x128xf32>
    %168 = arith.addf %167, %101 : vector<16x128xf32>
    %cst_55 = arith.constant 0.000000e+00 : f32
    %169 = vector.broadcast %cst_55 : f32 to vector<16x128xf32>
    %170 = arith.maximumf %168, %169 : vector<16x128xf32>
    %c2 = arith.constant 2 : index
    %c0_56 = arith.constant 0 : index
    %c0_57 = arith.constant 0 : index
    %171 = vector.load %arg6[%c2, %c0_56, %c0_57] : memref<5x6x128xf32, #tpu.memory_space<vmem>>, vector<1x6x128xf32>
    %172 = vector.shape_cast %171 : vector<1x6x128xf32> to vector<6x128xf32>
    %173 = arith.truncf %170 : vector<16x128xf32> to vector<16x128xbf16>
    %c2_58 = arith.constant 2 : index
    %c0_59 = arith.constant 0 : index
    %c0_60 = arith.constant 0 : index
    %174 = vector.load %arg4[%c2_58, %c0_59, %c0_60] : memref<5x128x128xbf16, #tpu.memory_space<vmem>>, vector<1x128x128xbf16>
    %175 = vector.shape_cast %174 : vector<1x128x128xbf16> to vector<128x128xbf16>
    %cst_61 = arith.constant dense<0.000000e+00> : vector<16x128xf32>
    %176 = tpu.matmul %173, %175, %cst_61 {dimension_numbers = #tpu.dot_dimension_numbers<[1], [0], [0], [1], [0, 0, 1, 1], [], []>} : vector<16x128xbf16>, vector<128x128xbf16>, vector<16x128xf32> -> vector<16x128xf32>
    %177 = vector.extract_strided_slice %172 {offsets = [0, 0], sizes = [1, 128], strides = [1, 1]} : vector<6x128xf32> to vector<1x128xf32>
    %178 = vector.broadcast %177 : vector<1x128xf32> to vector<16x128xf32>
    %179 = arith.addf %176, %178 : vector<16x128xf32>
    %180 = vector.extract_strided_slice %172 {offsets = [1, 0], sizes = [1, 128], strides = [1, 1]} : vector<6x128xf32> to vector<1x128xf32>
    %181 = vector.extract_strided_slice %172 {offsets = [2, 0], sizes = [1, 128], strides = [1, 1]} : vector<6x128xf32> to vector<1x128xf32>
    %cst_62 = arith.constant dense<0.000000e+00> : vector<16xf32>
    %182 = vector.multi_reduction <add>, %179, %cst_62 [1] : vector<16x128xf32> to vector<16xf32>
    %183 = vector.shape_cast %182 : vector<16xf32> to vector<16x1xf32>
    %184 = arith.mulf %179, %179 : vector<16x128xf32>
    %cst_63 = arith.constant dense<0.000000e+00> : vector<16xf32>
    %185 = vector.multi_reduction <add>, %184, %cst_63 [1] : vector<16x128xf32> to vector<16xf32>
    %186 = vector.shape_cast %185 : vector<16xf32> to vector<16x1xf32>
    %cst_64 = arith.constant 3.125000e-02 : f32
    %187 = vector.broadcast %cst_64 : f32 to vector<16x1xf32>
    %188 = arith.mulf %183, %187 : vector<16x1xf32>
    %cst_65 = arith.constant 3.125000e-02 : f32
    %189 = vector.broadcast %cst_65 : f32 to vector<16x1xf32>
    %190 = arith.mulf %186, %189 : vector<16x1xf32>
    %191 = arith.mulf %188, %188 : vector<16x1xf32>
    %192 = arith.subf %190, %191 : vector<16x1xf32>
    %cst_66 = arith.constant 9.99999974E-6 : f32
    %193 = vector.broadcast %cst_66 : f32 to vector<16x1xf32>
    %194 = arith.addf %192, %193 : vector<16x1xf32>
    %195 = math.rsqrt %194 : vector<16x1xf32>
    %196 = vector.broadcast %188 : vector<16x1xf32> to vector<16x128xf32>
    %197 = arith.subf %179, %196 : vector<16x128xf32>
    %198 = vector.broadcast %195 : vector<16x1xf32> to vector<16x128xf32>
    %199 = arith.mulf %197, %198 : vector<16x128xf32>
    %200 = vector.broadcast %180 : vector<1x128xf32> to vector<16x128xf32>
    %201 = arith.mulf %199, %200 : vector<16x128xf32>
    %202 = vector.broadcast %181 : vector<1x128xf32> to vector<16x128xf32>
    %203 = arith.addf %201, %202 : vector<16x128xf32>
    %cst_67 = arith.constant 0.000000e+00 : f32
    %204 = vector.broadcast %cst_67 : f32 to vector<16x128xf32>
    %205 = arith.maximumf %203, %204 : vector<16x128xf32>
    %206 = arith.truncf %205 : vector<16x128xf32> to vector<16x128xbf16>
    %c2_68 = arith.constant 2 : index
    %c0_69 = arith.constant 0 : index
    %c0_70 = arith.constant 0 : index
    %207 = vector.load %arg5[%c2_68, %c0_69, %c0_70] : memref<5x128x128xbf16, #tpu.memory_space<vmem>>, vector<1x128x128xbf16>
    %208 = vector.shape_cast %207 : vector<1x128x128xbf16> to vector<128x128xbf16>
    %cst_71 = arith.constant dense<0.000000e+00> : vector<16x128xf32>
    %209 = tpu.matmul %206, %208, %cst_71 {dimension_numbers = #tpu.dot_dimension_numbers<[1], [0], [0], [1], [0, 0, 1, 1], [], []>} : vector<16x128xbf16>, vector<128x128xbf16>, vector<16x128xf32> -> vector<16x128xf32>
    %210 = vector.extract_strided_slice %172 {offsets = [3, 0], sizes = [1, 128], strides = [1, 1]} : vector<6x128xf32> to vector<1x128xf32>
    %211 = vector.broadcast %210 : vector<1x128xf32> to vector<16x128xf32>
    %212 = arith.addf %209, %211 : vector<16x128xf32>
    %213 = vector.extract_strided_slice %172 {offsets = [4, 0], sizes = [1, 128], strides = [1, 1]} : vector<6x128xf32> to vector<1x128xf32>
    %214 = vector.extract_strided_slice %172 {offsets = [5, 0], sizes = [1, 128], strides = [1, 1]} : vector<6x128xf32> to vector<1x128xf32>
    %cst_72 = arith.constant dense<0.000000e+00> : vector<16xf32>
    %215 = vector.multi_reduction <add>, %212, %cst_72 [1] : vector<16x128xf32> to vector<16xf32>
    %216 = vector.shape_cast %215 : vector<16xf32> to vector<16x1xf32>
    %217 = arith.mulf %212, %212 : vector<16x128xf32>
    %cst_73 = arith.constant dense<0.000000e+00> : vector<16xf32>
    %218 = vector.multi_reduction <add>, %217, %cst_73 [1] : vector<16x128xf32> to vector<16xf32>
    %219 = vector.shape_cast %218 : vector<16xf32> to vector<16x1xf32>
    %cst_74 = arith.constant 3.125000e-02 : f32
    %220 = vector.broadcast %cst_74 : f32 to vector<16x1xf32>
    %221 = arith.mulf %216, %220 : vector<16x1xf32>
    %cst_75 = arith.constant 3.125000e-02 : f32
    %222 = vector.broadcast %cst_75 : f32 to vector<16x1xf32>
    %223 = arith.mulf %219, %222 : vector<16x1xf32>
    %224 = arith.mulf %221, %221 : vector<16x1xf32>
    %225 = arith.subf %223, %224 : vector<16x1xf32>
    %cst_76 = arith.constant 9.99999974E-6 : f32
    %226 = vector.broadcast %cst_76 : f32 to vector<16x1xf32>
    %227 = arith.addf %225, %226 : vector<16x1xf32>
    %228 = math.rsqrt %227 : vector<16x1xf32>
    %229 = vector.broadcast %221 : vector<16x1xf32> to vector<16x128xf32>
    %230 = arith.subf %212, %229 : vector<16x128xf32>
    %231 = vector.broadcast %228 : vector<16x1xf32> to vector<16x128xf32>
    %232 = arith.mulf %230, %231 : vector<16x128xf32>
    %233 = vector.broadcast %213 : vector<1x128xf32> to vector<16x128xf32>
    %234 = arith.mulf %232, %233 : vector<16x128xf32>
    %235 = vector.broadcast %214 : vector<1x128xf32> to vector<16x128xf32>
    %236 = arith.addf %234, %235 : vector<16x128xf32>
    %237 = arith.addf %236, %170 : vector<16x128xf32>
    %cst_77 = arith.constant 0.000000e+00 : f32
    %238 = vector.broadcast %cst_77 : f32 to vector<16x128xf32>
    %239 = arith.maximumf %237, %238 : vector<16x128xf32>
    %c3 = arith.constant 3 : index
    %c0_78 = arith.constant 0 : index
    %c0_79 = arith.constant 0 : index
    %240 = vector.load %arg6[%c3, %c0_78, %c0_79] : memref<5x6x128xf32, #tpu.memory_space<vmem>>, vector<1x6x128xf32>
    %241 = vector.shape_cast %240 : vector<1x6x128xf32> to vector<6x128xf32>
    %242 = arith.truncf %239 : vector<16x128xf32> to vector<16x128xbf16>
    %c3_80 = arith.constant 3 : index
    %c0_81 = arith.constant 0 : index
    %c0_82 = arith.constant 0 : index
    %243 = vector.load %arg4[%c3_80, %c0_81, %c0_82] : memref<5x128x128xbf16, #tpu.memory_space<vmem>>, vector<1x128x128xbf16>
    %244 = vector.shape_cast %243 : vector<1x128x128xbf16> to vector<128x128xbf16>
    %cst_83 = arith.constant dense<0.000000e+00> : vector<16x128xf32>
    %245 = tpu.matmul %242, %244, %cst_83 {dimension_numbers = #tpu.dot_dimension_numbers<[1], [0], [0], [1], [0, 0, 1, 1], [], []>} : vector<16x128xbf16>, vector<128x128xbf16>, vector<16x128xf32> -> vector<16x128xf32>
    %246 = vector.extract_strided_slice %241 {offsets = [0, 0], sizes = [1, 128], strides = [1, 1]} : vector<6x128xf32> to vector<1x128xf32>
    %247 = vector.broadcast %246 : vector<1x128xf32> to vector<16x128xf32>
    %248 = arith.addf %245, %247 : vector<16x128xf32>
    %249 = vector.extract_strided_slice %241 {offsets = [1, 0], sizes = [1, 128], strides = [1, 1]} : vector<6x128xf32> to vector<1x128xf32>
    %250 = vector.extract_strided_slice %241 {offsets = [2, 0], sizes = [1, 128], strides = [1, 1]} : vector<6x128xf32> to vector<1x128xf32>
    %cst_84 = arith.constant dense<0.000000e+00> : vector<16xf32>
    %251 = vector.multi_reduction <add>, %248, %cst_84 [1] : vector<16x128xf32> to vector<16xf32>
    %252 = vector.shape_cast %251 : vector<16xf32> to vector<16x1xf32>
    %253 = arith.mulf %248, %248 : vector<16x128xf32>
    %cst_85 = arith.constant dense<0.000000e+00> : vector<16xf32>
    %254 = vector.multi_reduction <add>, %253, %cst_85 [1] : vector<16x128xf32> to vector<16xf32>
    %255 = vector.shape_cast %254 : vector<16xf32> to vector<16x1xf32>
    %cst_86 = arith.constant 3.125000e-02 : f32
    %256 = vector.broadcast %cst_86 : f32 to vector<16x1xf32>
    %257 = arith.mulf %252, %256 : vector<16x1xf32>
    %cst_87 = arith.constant 3.125000e-02 : f32
    %258 = vector.broadcast %cst_87 : f32 to vector<16x1xf32>
    %259 = arith.mulf %255, %258 : vector<16x1xf32>
    %260 = arith.mulf %257, %257 : vector<16x1xf32>
    %261 = arith.subf %259, %260 : vector<16x1xf32>
    %cst_88 = arith.constant 9.99999974E-6 : f32
    %262 = vector.broadcast %cst_88 : f32 to vector<16x1xf32>
    %263 = arith.addf %261, %262 : vector<16x1xf32>
    %264 = math.rsqrt %263 : vector<16x1xf32>
    %265 = vector.broadcast %257 : vector<16x1xf32> to vector<16x128xf32>
    %266 = arith.subf %248, %265 : vector<16x128xf32>
    %267 = vector.broadcast %264 : vector<16x1xf32> to vector<16x128xf32>
    %268 = arith.mulf %266, %267 : vector<16x128xf32>
    %269 = vector.broadcast %249 : vector<1x128xf32> to vector<16x128xf32>
    %270 = arith.mulf %268, %269 : vector<16x128xf32>
    %271 = vector.broadcast %250 : vector<1x128xf32> to vector<16x128xf32>
    %272 = arith.addf %270, %271 : vector<16x128xf32>
    %cst_89 = arith.constant 0.000000e+00 : f32
    %273 = vector.broadcast %cst_89 : f32 to vector<16x128xf32>
    %274 = arith.maximumf %272, %273 : vector<16x128xf32>
    %275 = arith.truncf %274 : vector<16x128xf32> to vector<16x128xbf16>
    %c3_90 = arith.constant 3 : index
    %c0_91 = arith.constant 0 : index
    %c0_92 = arith.constant 0 : index
    %276 = vector.load %arg5[%c3_90, %c0_91, %c0_92] : memref<5x128x128xbf16, #tpu.memory_space<vmem>>, vector<1x128x128xbf16>
    %277 = vector.shape_cast %276 : vector<1x128x128xbf16> to vector<128x128xbf16>
    %cst_93 = arith.constant dense<0.000000e+00> : vector<16x128xf32>
    %278 = tpu.matmul %275, %277, %cst_93 {dimension_numbers = #tpu.dot_dimension_numbers<[1], [0], [0], [1], [0, 0, 1, 1], [], []>} : vector<16x128xbf16>, vector<128x128xbf16>, vector<16x128xf32> -> vector<16x128xf32>
    %279 = vector.extract_strided_slice %241 {offsets = [3, 0], sizes = [1, 128], strides = [1, 1]} : vector<6x128xf32> to vector<1x128xf32>
    %280 = vector.broadcast %279 : vector<1x128xf32> to vector<16x128xf32>
    %281 = arith.addf %278, %280 : vector<16x128xf32>
    %282 = vector.extract_strided_slice %241 {offsets = [4, 0], sizes = [1, 128], strides = [1, 1]} : vector<6x128xf32> to vector<1x128xf32>
    %283 = vector.extract_strided_slice %241 {offsets = [5, 0], sizes = [1, 128], strides = [1, 1]} : vector<6x128xf32> to vector<1x128xf32>
    %cst_94 = arith.constant dense<0.000000e+00> : vector<16xf32>
    %284 = vector.multi_reduction <add>, %281, %cst_94 [1] : vector<16x128xf32> to vector<16xf32>
    %285 = vector.shape_cast %284 : vector<16xf32> to vector<16x1xf32>
    %286 = arith.mulf %281, %281 : vector<16x128xf32>
    %cst_95 = arith.constant dense<0.000000e+00> : vector<16xf32>
    %287 = vector.multi_reduction <add>, %286, %cst_95 [1] : vector<16x128xf32> to vector<16xf32>
    %288 = vector.shape_cast %287 : vector<16xf32> to vector<16x1xf32>
    %cst_96 = arith.constant 3.125000e-02 : f32
    %289 = vector.broadcast %cst_96 : f32 to vector<16x1xf32>
    %290 = arith.mulf %285, %289 : vector<16x1xf32>
    %cst_97 = arith.constant 3.125000e-02 : f32
    %291 = vector.broadcast %cst_97 : f32 to vector<16x1xf32>
    %292 = arith.mulf %288, %291 : vector<16x1xf32>
    %293 = arith.mulf %290, %290 : vector<16x1xf32>
    %294 = arith.subf %292, %293 : vector<16x1xf32>
    %cst_98 = arith.constant 9.99999974E-6 : f32
    %295 = vector.broadcast %cst_98 : f32 to vector<16x1xf32>
    %296 = arith.addf %294, %295 : vector<16x1xf32>
    %297 = math.rsqrt %296 : vector<16x1xf32>
    %298 = vector.broadcast %290 : vector<16x1xf32> to vector<16x128xf32>
    %299 = arith.subf %281, %298 : vector<16x128xf32>
    %300 = vector.broadcast %297 : vector<16x1xf32> to vector<16x128xf32>
    %301 = arith.mulf %299, %300 : vector<16x128xf32>
    %302 = vector.broadcast %282 : vector<1x128xf32> to vector<16x128xf32>
    %303 = arith.mulf %301, %302 : vector<16x128xf32>
    %304 = vector.broadcast %283 : vector<1x128xf32> to vector<16x128xf32>
    %305 = arith.addf %303, %304 : vector<16x128xf32>
    %306 = arith.addf %305, %239 : vector<16x128xf32>
    %cst_99 = arith.constant 0.000000e+00 : f32
    %307 = vector.broadcast %cst_99 : f32 to vector<16x128xf32>
    %308 = arith.maximumf %306, %307 : vector<16x128xf32>
    %c4 = arith.constant 4 : index
    %c0_100 = arith.constant 0 : index
    %c0_101 = arith.constant 0 : index
    %309 = vector.load %arg6[%c4, %c0_100, %c0_101] : memref<5x6x128xf32, #tpu.memory_space<vmem>>, vector<1x6x128xf32>
    %310 = vector.shape_cast %309 : vector<1x6x128xf32> to vector<6x128xf32>
    %311 = arith.truncf %308 : vector<16x128xf32> to vector<16x128xbf16>
    %c4_102 = arith.constant 4 : index
    %c0_103 = arith.constant 0 : index
    %c0_104 = arith.constant 0 : index
    %312 = vector.load %arg4[%c4_102, %c0_103, %c0_104] : memref<5x128x128xbf16, #tpu.memory_space<vmem>>, vector<1x128x128xbf16>
    %313 = vector.shape_cast %312 : vector<1x128x128xbf16> to vector<128x128xbf16>
    %cst_105 = arith.constant dense<0.000000e+00> : vector<16x128xf32>
    %314 = tpu.matmul %311, %313, %cst_105 {dimension_numbers = #tpu.dot_dimension_numbers<[1], [0], [0], [1], [0, 0, 1, 1], [], []>} : vector<16x128xbf16>, vector<128x128xbf16>, vector<16x128xf32> -> vector<16x128xf32>
    %315 = vector.extract_strided_slice %310 {offsets = [0, 0], sizes = [1, 128], strides = [1, 1]} : vector<6x128xf32> to vector<1x128xf32>
    %316 = vector.broadcast %315 : vector<1x128xf32> to vector<16x128xf32>
    %317 = arith.addf %314, %316 : vector<16x128xf32>
    %318 = vector.extract_strided_slice %310 {offsets = [1, 0], sizes = [1, 128], strides = [1, 1]} : vector<6x128xf32> to vector<1x128xf32>
    %319 = vector.extract_strided_slice %310 {offsets = [2, 0], sizes = [1, 128], strides = [1, 1]} : vector<6x128xf32> to vector<1x128xf32>
    %cst_106 = arith.constant dense<0.000000e+00> : vector<16xf32>
    %320 = vector.multi_reduction <add>, %317, %cst_106 [1] : vector<16x128xf32> to vector<16xf32>
    %321 = vector.shape_cast %320 : vector<16xf32> to vector<16x1xf32>
    %322 = arith.mulf %317, %317 : vector<16x128xf32>
    %cst_107 = arith.constant dense<0.000000e+00> : vector<16xf32>
    %323 = vector.multi_reduction <add>, %322, %cst_107 [1] : vector<16x128xf32> to vector<16xf32>
    %324 = vector.shape_cast %323 : vector<16xf32> to vector<16x1xf32>
    %cst_108 = arith.constant 3.125000e-02 : f32
    %325 = vector.broadcast %cst_108 : f32 to vector<16x1xf32>
    %326 = arith.mulf %321, %325 : vector<16x1xf32>
    %cst_109 = arith.constant 3.125000e-02 : f32
    %327 = vector.broadcast %cst_109 : f32 to vector<16x1xf32>
    %328 = arith.mulf %324, %327 : vector<16x1xf32>
    %329 = arith.mulf %326, %326 : vector<16x1xf32>
    %330 = arith.subf %328, %329 : vector<16x1xf32>
    %cst_110 = arith.constant 9.99999974E-6 : f32
    %331 = vector.broadcast %cst_110 : f32 to vector<16x1xf32>
    %332 = arith.addf %330, %331 : vector<16x1xf32>
    %333 = math.rsqrt %332 : vector<16x1xf32>
    %334 = vector.broadcast %326 : vector<16x1xf32> to vector<16x128xf32>
    %335 = arith.subf %317, %334 : vector<16x128xf32>
    %336 = vector.broadcast %333 : vector<16x1xf32> to vector<16x128xf32>
    %337 = arith.mulf %335, %336 : vector<16x128xf32>
    %338 = vector.broadcast %318 : vector<1x128xf32> to vector<16x128xf32>
    %339 = arith.mulf %337, %338 : vector<16x128xf32>
    %340 = vector.broadcast %319 : vector<1x128xf32> to vector<16x128xf32>
    %341 = arith.addf %339, %340 : vector<16x128xf32>
    %cst_111 = arith.constant 0.000000e+00 : f32
    %342 = vector.broadcast %cst_111 : f32 to vector<16x128xf32>
    %343 = arith.maximumf %341, %342 : vector<16x128xf32>
    %344 = arith.truncf %343 : vector<16x128xf32> to vector<16x128xbf16>
    %c4_112 = arith.constant 4 : index
    %c0_113 = arith.constant 0 : index
    %c0_114 = arith.constant 0 : index
    %345 = vector.load %arg5[%c4_112, %c0_113, %c0_114] : memref<5x128x128xbf16, #tpu.memory_space<vmem>>, vector<1x128x128xbf16>
    %346 = vector.shape_cast %345 : vector<1x128x128xbf16> to vector<128x128xbf16>
    %cst_115 = arith.constant dense<0.000000e+00> : vector<16x128xf32>
    %347 = tpu.matmul %344, %346, %cst_115 {dimension_numbers = #tpu.dot_dimension_numbers<[1], [0], [0], [1], [0, 0, 1, 1], [], []>} : vector<16x128xbf16>, vector<128x128xbf16>, vector<16x128xf32> -> vector<16x128xf32>
    %348 = vector.extract_strided_slice %310 {offsets = [3, 0], sizes = [1, 128], strides = [1, 1]} : vector<6x128xf32> to vector<1x128xf32>
    %349 = vector.broadcast %348 : vector<1x128xf32> to vector<16x128xf32>
    %350 = arith.addf %347, %349 : vector<16x128xf32>
    %351 = vector.extract_strided_slice %310 {offsets = [4, 0], sizes = [1, 128], strides = [1, 1]} : vector<6x128xf32> to vector<1x128xf32>
    %352 = vector.extract_strided_slice %310 {offsets = [5, 0], sizes = [1, 128], strides = [1, 1]} : vector<6x128xf32> to vector<1x128xf32>
    %cst_116 = arith.constant dense<0.000000e+00> : vector<16xf32>
    %353 = vector.multi_reduction <add>, %350, %cst_116 [1] : vector<16x128xf32> to vector<16xf32>
    %354 = vector.shape_cast %353 : vector<16xf32> to vector<16x1xf32>
    %355 = arith.mulf %350, %350 : vector<16x128xf32>
    %cst_117 = arith.constant dense<0.000000e+00> : vector<16xf32>
    %356 = vector.multi_reduction <add>, %355, %cst_117 [1] : vector<16x128xf32> to vector<16xf32>
    %357 = vector.shape_cast %356 : vector<16xf32> to vector<16x1xf32>
    %cst_118 = arith.constant 3.125000e-02 : f32
    %358 = vector.broadcast %cst_118 : f32 to vector<16x1xf32>
    %359 = arith.mulf %354, %358 : vector<16x1xf32>
    %cst_119 = arith.constant 3.125000e-02 : f32
    %360 = vector.broadcast %cst_119 : f32 to vector<16x1xf32>
    %361 = arith.mulf %357, %360 : vector<16x1xf32>
    %362 = arith.mulf %359, %359 : vector<16x1xf32>
    %363 = arith.subf %361, %362 : vector<16x1xf32>
    %cst_120 = arith.constant 9.99999974E-6 : f32
    %364 = vector.broadcast %cst_120 : f32 to vector<16x1xf32>
    %365 = arith.addf %363, %364 : vector<16x1xf32>
    %366 = math.rsqrt %365 : vector<16x1xf32>
    %367 = vector.broadcast %359 : vector<16x1xf32> to vector<16x128xf32>
    %368 = arith.subf %350, %367 : vector<16x128xf32>
    %369 = vector.broadcast %366 : vector<16x1xf32> to vector<16x128xf32>
    %370 = arith.mulf %368, %369 : vector<16x128xf32>
    %371 = vector.broadcast %351 : vector<1x128xf32> to vector<16x128xf32>
    %372 = arith.mulf %370, %371 : vector<16x128xf32>
    %373 = vector.broadcast %352 : vector<1x128xf32> to vector<16x128xf32>
    %374 = arith.addf %372, %373 : vector<16x128xf32>
    %375 = arith.addf %374, %308 : vector<16x128xf32>
    %cst_121 = arith.constant 0.000000e+00 : f32
    %376 = vector.broadcast %cst_121 : f32 to vector<16x128xf32>
    %377 = arith.maximumf %375, %376 : vector<16x128xf32>
    %378 = arith.truncf %377 : vector<16x128xf32> to vector<16x128xbf16>
    %c0_122 = arith.constant 0 : index
    %c0_123 = arith.constant 0 : index
    %379 = vector.load %arg7[%c0_122, %c0_123] : memref<128x128xbf16, #tpu.memory_space<vmem>>, vector<128x128xbf16>
    %cst_124 = arith.constant dense<0.000000e+00> : vector<16x128xf32>
    %380 = tpu.matmul %378, %379, %cst_124 {dimension_numbers = #tpu.dot_dimension_numbers<[1], [0], [0], [1], [0, 0, 1, 1], [], []>} : vector<16x128xbf16>, vector<128x128xbf16>, vector<16x128xf32> -> vector<16x128xf32>
    %c0_125 = arith.constant 0 : index
    %c0_126 = arith.constant 0 : index
    %381 = vector.load %arg8[%c0_125, %c0_126] : memref<1x128xf32, #tpu.memory_space<vmem>>, vector<1x128xf32>
    %382 = vector.broadcast %381 : vector<1x128xf32> to vector<16x128xf32>
    %383 = arith.addf %380, %382 : vector<16x128xf32>
    %c0_127 = arith.constant 0 : index
    %c0_128 = arith.constant 0 : index
    %384 = vector.load %arg9[%c0_127, %c0_128] : memref<16x128xf32, #tpu.memory_space<vmem>>, vector<16x128xf32>
    tpu.vector_store %arg9[%c0_127, %c0_128], %383 {strides = array<i32>} : memref<16x128xf32, #tpu.memory_space<vmem>>, vector<16x128xf32>,
    return
  }
  func.func @transform_0(%arg0: i32) -> (i32, i32) {
    %c0_i32 = arith.constant 0 : i32
    %c0_i32_0 = arith.constant 0 : i32
    return %arg0, %c0_i32 : i32, i32
  }
  func.func @transform_1(%arg0: i32) -> (i32, i32) {
    %c0_i32 = arith.constant 0 : i32
    %c0_i32_0 = arith.constant 0 : i32
    %c0_i32_1 = arith.constant 0 : i32
    return %c0_i32, %c0_i32_0 : i32, i32
  }
  func.func @transform_2(%arg0: i32) -> (i32, i32) {
    %c0_i32 = arith.constant 0 : i32
    %c0_i32_0 = arith.constant 0 : i32
    %c0_i32_1 = arith.constant 0 : i32
    return %c0_i32, %c0_i32_0 : i32, i32
  }
  func.func @transform_3(%arg0: i32) -> (i32, i32, i32) {
    %c0_i32 = arith.constant 0 : i32
    %c0_i32_0 = arith.constant 0 : i32
    %c0_i32_1 = arith.constant 0 : i32
    %c0_i32_2 = arith.constant 0 : i32
    return %c0_i32, %c0_i32_0, %c0_i32_1 : i32, i32, i32
  }
  func.func @transform_4(%arg0: i32) -> (i32, i32, i32) {
    %c0_i32 = arith.constant 0 : i32
    %c0_i32_0 = arith.constant 0 : i32
    %c0_i32_1 = arith.constant 0 : i32
    %c0_i32_2 = arith.constant 0 : i32
    return %c0_i32, %c0_i32_0, %c0_i32_1 : i32, i32, i32
  }
  func.func @transform_5(%arg0: i32) -> (i32, i32, i32) {
    %c0_i32 = arith.constant 0 : i32
    %c0_i32_0 = arith.constant 0 : i32
    %c0_i32_1 = arith.constant 0 : i32
    %c0_i32_2 = arith.constant 0 : i32
    return %c0_i32, %c0_i32_0, %c0_i32_1 : i32, i32, i32
  }
  func.func @transform_6(%arg0: i32) -> (i32, i32) {
    %c0_i32 = arith.constant 0 : i32
    %c0_i32_0 = arith.constant 0 : i32
    %c0_i32_1 = arith.constant 0 : i32
    return %c0_i32, %c0_i32_0 : i32, i32
  }
  func.func @transform_7(%arg0: i32) -> (i32, i32) {
    %c0_i32 = arith.constant 0 : i32
    %c0_i32_0 = arith.constant 0 : i32
    %c0_i32_1 = arith.constant 0 : i32
    return %c0_i32, %c0_i32_0 : i32, i32
  }
  func.func @transform_8(%arg0: i32) -> (i32, i32) {
    %c0_i32 = arith.constant 0 : i32
    %c0_i32_0 = arith.constant 0 : i32
    return %arg0, %c0_i32 : i32, i32
  }
}

</mosaic_0001>

<llo_original>
// kernel: tpu_custom_call.1
$region0: #{tpu_custom_call.1}
  #allocation0 [shape = 'u32[]', space=smem, size = 0x4, offset = 0x4, fixed_abs, tag = 'smem constant byte address 0x4 - core index']
  #allocation1 [shape = 'u32[144,128]{1,0:T(1,128)}', space=vmem, size = 0x12000, scoped, tag = 'internal scratch']
  %s0 = inlined_call_operand.hbm [shape: bf16[16,768], index: 0, kind: input, shape index: {}]
  %s1 = inlined_call_operand.hbm [shape: bf16[768,128], index: 1, kind: input, shape index: {}]
  %s2 = inlined_call_operand.hbm [shape: f32[3,128], index: 2, kind: input, shape index: {}]
  %s3 = inlined_call_operand.hbm [shape: bf16[5,128,128], index: 3, kind: input, shape index: {}]
  %s4 = inlined_call_operand.hbm [shape: bf16[5,128,128], index: 4, kind: input, shape index: {}]
  %s5 = inlined_call_operand.hbm [shape: f32[5,6,128], index: 5, kind: input, shape index: {}]
  %s6 = inlined_call_operand.hbm [shape: bf16[128,128], index: 6, kind: input, shape index: {}]
  %s7 = inlined_call_operand.vmem [shape: f32[1,128], index: 7, kind: input, shape index: {}]
  %s8 = inlined_call_operand.hbm [shape: f32[16,128], index: 8, kind: output, shape index: {}]
  %s9 = sld [smem:[#allocation0]]
  $region70: #{tpu_custom_call.1} parent=0
    _
  %s11 = ssub.s32 1, %s9
  %s12 = scalar_select 0, %s11, %s9
  $region1: #{tpu_custom_call.1} parent=0
    #allocation2 [shape = 'u8[24576]{0}', space=vmem, size = 0x6000, scoped, tag = 'input window, operand 0, single buffered']
    #allocation3 [shape = 's32[1]{0}', space=sflag, size = 0x4, scoped, tag = 'scoped memory for tpu_custom_call.1']
    #allocation4 [shape = 's32[1]{0}', space=sflag, size = 0x4, scoped, tag = 'scoped memory for tpu_custom_call.1']
    #allocation5 [shape = 'u8[196608]{0}', space=vmem, size = 0x30000, scoped, tag = 'input window, operand 1, single buffered']
    #allocation6 [shape = 's32[1]{0}', space=sflag, size = 0x4, scoped, tag = 'scoped memory for tpu_custom_call.1']
    #allocation7 [shape = 'u8[2048]{0}', space=vmem, size = 0x800, scoped, tag = 'input window, operand 2, single buffered']
    #allocation8 [shape = 'u8[163840]{0}', space=vmem, size = 0x28000, scoped, tag = 'input window, operand 3, single buffered']
    #allocation9 [shape = 's32[1]{0}', space=sflag, size = 0x4, scoped, tag = 'scoped memory for tpu_custom_call.1']
    #allocation10 [shape = 'u8[163840]{0}', space=vmem, size = 0x28000, scoped, tag = 'input window, operand 4, single buffered']
    #allocation11 [shape = 'u8[20480]{0}', space=vmem, size = 0x5000, scoped, tag = 'input window, operand 5, single buffered']
    #allocation12 [shape = 's32[1]{0}', space=sflag, size = 0x4, scoped, tag = 'scoped memory for tpu_custom_call.1']
    #allocation13 [shape = 'u8[32768]{0}', space=vmem, size = 0x8000, scoped, tag = 'input window, operand 6, single buffered']
    #allocation14 [shape = 'u8[8192]{0}', space=vmem, size = 0x2000, scoped, tag = 'output window, operand 0, single buffered']
    %13 = vsyncpa [#allocation3], 0
    %14 = vsyncpa [#allocation6], 0
    %15 = vsyncpa [#allocation9], 0
    %16 = vsyncpa [#allocation12], 0
    %17 = vsyncpa [#allocation4], 0
    // Predicated region
    $region2: #{tpu_custom_call.1} parent=1 // pred_check
      _
    $region3: #{tpu_custom_call.1} parent=1 // pred_check_branch
      %19 = sbr.rel (0) target = $region5
    $region4: #{tpu_custom_call.1} parent=1 // pred_region
      %s21 = ssub.s32 768, 768
      %22 = vsyncadd [#allocation3], %s21
      %s23 = sshll.u32 [#allocation2], 4
      %s24 = int_to_ptr.vmem [resolvable:$true] %s23
      %29 = dma.hbm_to_vmem [thread:$0]  %s0, 768, %s24, [#allocation3], 384, 384, 24
    $region5: #{tpu_custom_call.1} parent=1 // pred_fallthru
      _
    // Predicated region
    $region6: #{tpu_custom_call.1} parent=1 // pred_check
      _
    $region7: #{tpu_custom_call.1} parent=1 // pred_check_branch
      %31 = sbr.rel (0) target = $region9
    $region8: #{tpu_custom_call.1} parent=1 // pred_region
      %s33 = ssub.s32 6144, 6144
      %34 = vsyncadd [#allocation6], %s33
      %s35 = sshll.u32 [#allocation5], 4
      %s36 = int_to_ptr.vmem [resolvable:$true] %s35
      %41 = dma.hbm_to_vmem [thread:$0]  %s1, 6144, %s36, [#allocation6], 64, 64, 4
    $region9: #{tpu_custom_call.1} parent=1 // pred_fallthru
      _
    // Predicated region
    $region10: #{tpu_custom_call.1} parent=1 // pred_check
      _
    $region11: #{tpu_custom_call.1} parent=1 // pred_check_branch
      %43 = sbr.rel (0) target = $region13
    $region12: #{tpu_custom_call.1} parent=1 // pred_region
      %s45 = ssub.s32 64, 64
      %46 = vsyncadd [#allocation6], %s45
      %s48 = sshll.u32 [#allocation7], 4
      %s49 = int_to_ptr.vmem [resolvable:$true] %s48
      %51 = dma.hbm_to_vmem [thread:$0]  %s2, 64, %s49, [#allocation6]
    $region13: #{tpu_custom_call.1} parent=1 // pred_fallthru
      _
    // Predicated region
    $region14: #{tpu_custom_call.1} parent=1 // pred_check
      _
    $region15: #{tpu_custom_call.1} parent=1 // pred_check_branch
      %53 = sbr.rel (0) target = $region17
    $region16: #{tpu_custom_call.1} parent=1 // pred_region
      %s55 = ssub.s32 5120, 5120
      %56 = vsyncadd [#allocation9], %s55
      %s57 = sshll.u32 [#allocation8], 4
      %s58 = int_to_ptr.vmem [resolvable:$true] %s57
      %63 = dma.hbm_to_vmem [thread:$0]  %s3, 5120, %s58, [#allocation9], 64, 64, 4
    $region17: #{tpu_custom_call.1} parent=1 // pred_fallthru
      _
    // Predicated region
    $region18: #{tpu_custom_call.1} parent=1 // pred_check
      _
    $region19: #{tpu_custom_call.1} parent=1 // pred_check_branch
      %65 = sbr.rel (0) target = $region21
    $region20: #{tpu_custom_call.1} parent=1 // pred_region
      %s67 = ssub.s32 5120, 5120
      %68 = vsyncadd [#allocation9], %s67
      %s69 = sshll.u32 [#allocation10], 4
      %s70 = int_to_ptr.vmem [resolvable:$true] %s69
      %75 = dma.hbm_to_vmem [thread:$0]  %s4, 5120, %s70, [#allocation9], 64, 64, 4
    $region21: #{tpu_custom_call.1} parent=1 // pred_fallthru
      _
    // Predicated region
    $region22: #{tpu_custom_call.1} parent=1 // pred_check
      _
    $region23: #{tpu_custom_call.1} parent=1 // pred_check_branch
      %77 = sbr.rel (0) target = $region25
    $region24: #{tpu_custom_call.1} parent=1 // pred_region
      %s79 = ssub.s32 640, 640
      %80 = vsyncadd [#allocation12], %s79
      %s81 = sshll.u32 [#allocation11], 4
      %s82 = int_to_ptr.vmem [resolvable:$true] %s81
      %87 = dma.hbm_to_vmem [thread:$0]  %s5, 640, %s82, [#allocation12], 128, 128, 8
    $region25: #{tpu_custom_call.1} parent=1 // pred_fallthru
      _
    // Predicated region
    $region26: #{tpu_custom_call.1} parent=1 // pred_check
      _
    $region27: #{tpu_custom_call.1} parent=1 // pred_check_branch
      %89 = sbr.rel (0) target = $region29
    $region28: #{tpu_custom_call.1} parent=1 // pred_region
      %s91 = ssub.s32 1024, 1024
      %92 = vsyncadd [#allocation12], %s91
      %s93 = sshll.u32 [#allocation13], 4
      %s94 = int_to_ptr.vmem [resolvable:$true] %s93
      %99 = dma.hbm_to_vmem [thread:$0]  %s6, 1024, %s94, [#allocation12], 64, 64, 4
    $region29: #{tpu_custom_call.1} parent=1 // pred_fallthru
      _
    // Predicated region
    $region30: #{tpu_custom_call.1} parent=1 // pred_check
      _
    $region31: #{tpu_custom_call.1} parent=1 // pred_check_branch
      %101 = sbr.rel (0) target = $region33
    $region32: #{tpu_custom_call.1} parent=1 // pred_region
      _
    $region33: #{tpu_custom_call.1} parent=1 // pred_fallthru
      _
    // Predicated region
    $region34: #{tpu_custom_call.1} parent=1 // pred_check
      _
    $region35: #{tpu_custom_call.1} parent=1 // pred_check_branch
      %103 = sbr.rel (0) target = $region37
    $region36: #{tpu_custom_call.1} parent=1 // pred_region
      %104 = dma.done [#allocation3], 768
    $region37: #{tpu_custom_call.1} parent=1 // pred_fallthru
      _
    // Predicated region
    $region38: #{tpu_custom_call.1} parent=1 // pred_check
      _
    $region39: #{tpu_custom_call.1} parent=1 // pred_check_branch
      %106 = sbr.rel (0) target = $region41
    $region40: #{tpu_custom_call.1} parent=1 // pred_region
      %107 = dma.done [#allocation6], 6144
    $region41: #{tpu_custom_call.1} parent=1 // pred_fallthru
      _
    // Predicated region
    $region42: #{tpu_custom_call.1} parent=1 // pred_check
      _
    $region43: #{tpu_custom_call.1} parent=1 // pred_check_branch
      %109 = sbr.rel (0) target = $region45
    $region44: #{tpu_custom_call.1} parent=1 // pred_region
      %110 = dma.done [#allocation6], 64
    $region45: #{tpu_custom_call.1} parent=1 // pred_fallthru
      _
    // Predicated region
    $region46: #{tpu_custom_call.1} parent=1 // pred_check
      _
    $region47: #{tpu_custom_call.1} parent=1 // pred_check_branch
      %112 = sbr.rel (0) target = $region49
    $region48: #{tpu_custom_call.1} parent=1 // pred_region
      %113 = dma.done [#allocation9], 5120
    $region49: #{tpu_custom_call.1} parent=1 // pred_fallthru
      _
    // Predicated region
    $region50: #{tpu_custom_call.1} parent=1 // pred_check
      _
    $region51: #{tpu_custom_call.1} parent=1 // pred_check_branch
      %115 = sbr.rel (0) target = $region53
    $region52: #{tpu_custom_call.1} parent=1 // pred_region
      %116 = dma.done [#allocation9], 5120
    $region53: #{tpu_custom_call.1} parent=1 // pred_fallthru
      _
    // Predicated region
    $region54: #{tpu_custom_call.1} parent=1 // pred_check
      _
    $region55: #{tpu_custom_call.1} parent=1 // pred_check_branch
      %118 = sbr.rel (0) target = $region57
    $region56: #{tpu_custom_call.1} parent=1 // pred_region
      %119 = dma.done [#allocation12], 640
    $region57: #{tpu_custom_call.1} parent=1 // pred_fallthru
      _
    // Predicated region
    $region58: #{tpu_custom_call.1} parent=1 // pred_check
      _
    $region59: #{tpu_custom_call.1} parent=1 // pred_check_branch
      %121 = sbr.rel (0) target = $region61
    $region60: #{tpu_custom_call.1} parent=1 // pred_region
      %122 = dma.done [#allocation12], 1024
    $region61: #{tpu_custom_call.1} parent=1 // pred_fallthru
      _
    %v124 = vld [vmem:[#allocation7] sm:$0x7]
    %v125 = vld [vmem:[#allocation2] sm:$0xff]
    %v126 = vld [vmem:[#allocation2 + $0x8] sm:$0xff]
    %v127 = vld [vmem:[#allocation2 + $0x10] sm:$0xff]
    %v128 = vld [vmem:[#allocation2 + $0x18] sm:$0xff]
    %v129 = vld [vmem:[#allocation2 + $0x20] sm:$0xff]
    %v130 = vld [vmem:[#allocation2 + $0x28] sm:$0xff]
    %v131 = vld [vmem:[#allocation5] sm:$0xf]
    %v132 = vld [vmem:[#allocation5 + $0x4] sm:$0xf]
    %v133 = vld [vmem:[#allocation5 + $0x8] sm:$0xf]
    %v134 = vld [vmem:[#allocation5 + $0xc] sm:$0xf]
    %v135 = vld [vmem:[#allocation5 + $0x10] sm:$0xf]
    %v136 = vld [vmem:[#allocation5 + $0x14] sm:$0xf]
    %v137 = vld [vmem:[#allocation5 + $0x18] sm:$0xf]
    %v138 = vld [vmem:[#allocation5 + $0x1c] sm:$0xf]
    %v139 = vld [vmem:[#allocation5 + $0x20] sm:$0xf]
    %v140 = vld [vmem:[#allocation5 + $0x24] sm:$0xf]
    %v141 = vld [vmem:[#allocation5 + $0x28] sm:$0xf]
    %v142 = vld [vmem:[#allocation5 + $0x2c] sm:$0xf]
    %v143 = vld [vmem:[#allocation5 + $0x30] sm:$0xf]
    %v144 = vld [vmem:[#allocation5 + $0x34] sm:$0xf]
    %v145 = vld [vmem:[#allocation5 + $0x38] sm:$0xf]
    %v146 = vld [vmem:[#allocation5 + $0x3c] sm:$0xf]
    %v147 = vld [vmem:[#allocation5 + $0x40] sm:$0xf]
    %v148 = vld [vmem:[#allocation5 + $0x44] sm:$0xf]
    %v149 = vld [vmem:[#allocation5 + $0x48] sm:$0xf]
    %v150 = vld [vmem:[#allocation5 + $0x4c] sm:$0xf]
    %v151 = vld [vmem:[#allocation5 + $0x50] sm:$0xf]
    %v152 = vld [vmem:[#allocation5 + $0x54] sm:$0xf]
    %v153 = vld [vmem:[#allocation5 + $0x58] sm:$0xf]
    %v154 = vld [vmem:[#allocation5 + $0x5c] sm:$0xf]
    %v155 = vld [vmem:[#allocation5 + $0x60] sm:$0xf]
    %v156 = vld [vmem:[#allocation5 + $0x64] sm:$0xf]
    %v157 = vld [vmem:[#allocation5 + $0x68] sm:$0xf]
    %v158 = vld [vmem:[#allocation5 + $0x6c] sm:$0xf]
    %v159 = vld [vmem:[#allocation5 + $0x70] sm:$0xf]
    %v160 = vld [vmem:[#allocation5 + $0x74] sm:$0xf]
    %v161 = vld [vmem:[#allocation5 + $0x78] sm:$0xf]
    %v162 = vld [vmem:[#allocation5 + $0x7c] sm:$0xf]
    %v163 = vld [vmem:[#allocation5 + $0x80] sm:$0xf]
    %v164 = vld [vmem:[#allocation5 + $0x84] sm:$0xf]
    %v165 = vld [vmem:[#allocation5 + $0x88] sm:$0xf]
    %v166 = vld [vmem:[#allocation5 + $0x8c] sm:$0xf]
    %v167 = vld [vmem:[#allocation5 + $0x90] sm:$0xf]
    %v168 = vld [vmem:[#allocation5 + $0x94] sm:$0xf]
    %v169 = vld [vmem:[#allocation5 + $0x98] sm:$0xf]
    %v170 = vld [vmem:[#allocation5 + $0x9c] sm:$0xf]
    %v171 = vld [vmem:[#allocation5 + $0xa0] sm:$0xf]
    %v172 = vld [vmem:[#allocation5 + $0xa4] sm:$0xf]
    %v173 = vld [vmem:[#allocation5 + $0xa8] sm:$0xf]
    %v174 = vld [vmem:[#allocation5 + $0xac] sm:$0xf]
    %v175 = vld [vmem:[#allocation5 + $0xb0] sm:$0xf]
    %v176 = vld [vmem:[#allocation5 + $0xb4] sm:$0xf]
    %v177 = vld [vmem:[#allocation5 + $0xb8] sm:$0xf]
    %v178 = vld [vmem:[#allocation5 + $0xbc] sm:$0xf]
    %v179 = vld [vmem:[#allocation5 + $0xc0] sm:$0xf]
    %v180 = vld [vmem:[#allocation5 + $0xc4] sm:$0xf]
    %v181 = vld [vmem:[#allocation5 + $0xc8] sm:$0xf]
    %v182 = vld [vmem:[#allocation5 + $0xcc] sm:$0xf]
    %v183 = vld [vmem:[#allocation5 + $0xd0] sm:$0xf]
    %v184 = vld [vmem:[#allocation5 + $0xd4] sm:$0xf]
    %v185 = vld [vmem:[#allocation5 + $0xd8] sm:$0xf]
    %v186 = vld [vmem:[#allocation5 + $0xdc] sm:$0xf]
    %v187 = vld [vmem:[#allocation5 + $0xe0] sm:$0xf]
    %v188 = vld [vmem:[#allocation5 + $0xe4] sm:$0xf]
    %v189 = vld [vmem:[#allocation5 + $0xe8] sm:$0xf]
    %v190 = vld [vmem:[#allocation5 + $0xec] sm:$0xf]
    %v191 = vld [vmem:[#allocation5 + $0xf0] sm:$0xf]
    %v192 = vld [vmem:[#allocation5 + $0xf4] sm:$0xf]
    %v193 = vld [vmem:[#allocation5 + $0xf8] sm:$0xf]
    %v194 = vld [vmem:[#allocation5 + $0xfc] sm:$0xf]
    %v195 = vld [vmem:[#allocation5 + $0x100] sm:$0xf]
    %v196 = vld [vmem:[#allocation5 + $0x104] sm:$0xf]
    %v197 = vld [vmem:[#allocation5 + $0x108] sm:$0xf]
    %v198 = vld [vmem:[#allocation5 + $0x10c] sm:$0xf]
    %v199 = vld [vmem:[#allocation5 + $0x110] sm:$0xf]
    %v200 = vld [vmem:[#allocation5 + $0x114] sm:$0xf]
    %v201 = vld [vmem:[#allocation5 + $0x118] sm:$0xf]
    %v202 = vld [vmem:[#allocation5 + $0x11c] sm:$0xf]
    %v203 = vld [vmem:[#allocation5 + $0x120] sm:$0xf]
    %v204 = vld [vmem:[#allocation5 + $0x124] sm:$0xf]
    %v205 = vld [vmem:[#allocation5 + $0x128] sm:$0xf]
    %v206 = vld [vmem:[#allocation5 + $0x12c] sm:$0xf]
    %v207 = vld [vmem:[#allocation5 + $0x130] sm:$0xf]
    %v208 = vld [vmem:[#allocation5 + $0x134] sm:$0xf]
    %v209 = vld [vmem:[#allocation5 + $0x138] sm:$0xf]
    %v210 = vld [vmem:[#allocation5 + $0x13c] sm:$0xf]
    %v211 = vld [vmem:[#allocation5 + $0x140] sm:$0xf]
    %v212 = vld [vmem:[#allocation5 + $0x144] sm:$0xf]
    %v213 = vld [vmem:[#allocation5 + $0x148] sm:$0xf]
    %v214 = vld [vmem:[#allocation5 + $0x14c] sm:$0xf]
    %v215 = vld [vmem:[#allocation5 + $0x150] sm:$0xf]
    %v216 = vld [vmem:[#allocation5 + $0x154] sm:$0xf]
    %v217 = vld [vmem:[#allocation5 + $0x158] sm:$0xf]
    %v218 = vld [vmem:[#allocation5 + $0x15c] sm:$0xf]
    %v219 = vld [vmem:[#allocation5 + $0x160] sm:$0xf]
    %v220 = vld [vmem:[#allocation5 + $0x164] sm:$0xf]
    %v221 = vld [vmem:[#allocation5 + $0x168] sm:$0xf]
    %v222 = vld [vmem:[#allocation5 + $0x16c] sm:$0xf]
    %v223 = vld [vmem:[#allocation5 + $0x170] sm:$0xf]
    %v224 = vld [vmem:[#allocation5 + $0x174] sm:$0xf]
    %v225 = vld [vmem:[#allocation5 + $0x178] sm:$0xf]
    %v226 = vld [vmem:[#allocation5 + $0x17c] sm:$0xf]
    %v227 = vlaneseq
    %v228 = vshrl.u32 %v227, 7
    %v229 = vsub.s32 0, %v228
    %v230 = vrot.slane %v124, %v229
    %v237 = vunpack.c.l.b16 %v125
    %v238 = vunpack.c.h.b16 %v125
    %v239 = vunpack.c.l.b16 %v126
    %v240 = vunpack.c.h.b16 %v126
    %v241 = vunpack.c.l.b16 %v127
    %v242 = vunpack.c.h.b16 %v127
    %v243 = vunpack.c.l.b16 %v128
    %v244 = vunpack.c.h.b16 %v128
    %v245 = vunpack.c.l.b16 %v129
    %v246 = vunpack.c.h.b16 %v129
    %v247 = vunpack.c.l.b16 %v130
    %v248 = vunpack.c.h.b16 %v130
    %v249 = vpack.c.b16 %v243, %v237
    %v250 = vpack.c.b16 %v244, %v238
    %v251 = vpack.c.b16 %v245, %v239
    %v252 = vpack.c.b16 %v246, %v240
    %v253 = vpack.c.b16 %v247, %v241
    %v254 = vpack.c.b16 %v248, %v242
    %v357 = vunpack.c.l.b16 %v131
    %v358 = vunpack.c.l.b16 %v132
    %v359 = vunpack.c.l.b16 %v133
    %v360 = vunpack.c.l.b16 %v134
    %v361 = vunpack.c.l.b16 %v135
    %v362 = vunpack.c.l.b16 %v136
    %v363 = vunpack.c.l.b16 %v137
    %v364 = vunpack.c.l.b16 %v138
    %v365 = vunpack.c.l.b16 %v139
    %v366 = vunpack.c.l.b16 %v140
    %v367 = vunpack.c.l.b16 %v141
    %v368 = vunpack.c.l.b16 %v142
    %v369 = vunpack.c.l.b16 %v143
    %v370 = vunpack.c.l.b16 %v144
    %v371 = vunpack.c.l.b16 %v145
    %v372 = vunpack.c.l.b16 %v146
    %v373 = vunpack.c.l.b16 %v147
    %v374 = vunpack.c.l.b16 %v148
    %v375 = vunpack.c.l.b16 %v149
    %v376 = vunpack.c.l.b16 %v150
    %v377 = vunpack.c.l.b16 %v151
    %v378 = vunpack.c.l.b16 %v152
    %v379 = vunpack.c.l.b16 %v153
    %v380 = vunpack.c.l.b16 %v154
    %v381 = vunpack.c.l.b16 %v155
    %v382 = vunpack.c.l.b16 %v156
    %v383 = vunpack.c.l.b16 %v157
    %v384 = vunpack.c.l.b16 %v158
    %v385 = vunpack.c.l.b16 %v159
    %v386 = vunpack.c.l.b16 %v160
    %v387 = vunpack.c.l.b16 %v161
    %v388 = vunpack.c.l.b16 %v162
    %v389 = vunpack.c.l.b16 %v163
    %v390 = vunpack.c.l.b16 %v164
    %v391 = vunpack.c.l.b16 %v165
    %v392 = vunpack.c.l.b16 %v166
    %v393 = vunpack.c.l.b16 %v167
    %v394 = vunpack.c.l.b16 %v168
    %v395 = vunpack.c.l.b16 %v169
    %v396 = vunpack.c.l.b16 %v170
    %v397 = vunpack.c.l.b16 %v171
    %v398 = vunpack.c.l.b16 %v172
    %v399 = vunpack.c.l.b16 %v173
    %v400 = vunpack.c.l.b16 %v174
    %v401 = vunpack.c.l.b16 %v175
    %v402 = vunpack.c.l.b16 %v176
    %v403 = vunpack.c.l.b16 %v177
    %v404 = vunpack.c.l.b16 %v178
    %v405 = vunpack.c.l.b16 %v179
    %v406 = vunpack.c.l.b16 %v180
    %v407 = vunpack.c.l.b16 %v181
    %v408 = vunpack.c.l.b16 %v182
    %v409 = vunpack.c.l.b16 %v183
    %v410 = vunpack.c.l.b16 %v184
    %v411 = vunpack.c.l.b16 %v185
    %v412 = vunpack.c.l.b16 %v186
    %v413 = vunpack.c.l.b16 %v187
    %v414 = vunpack.c.l.b16 %v188
    %v415 = vunpack.c.l.b16 %v189
    %v416 = vunpack.c.l.b16 %v190
    %v417 = vunpack.c.l.b16 %v191
    %v418 = vunpack.c.l.b16 %v192
    %v419 = vunpack.c.l.b16 %v193
    %v420 = vunpack.c.l.b16 %v194
    %v421 = vunpack.c.l.b16 %v195
    %v422 = vunpack.c.l.b16 %v196
    %v423 = vunpack.c.l.b16 %v197
    %v424 = vunpack.c.l.b16 %v198
    %v425 = vunpack.c.l.b16 %v199
    %v426 = vunpack.c.l.b16 %v200
    %v427 = vunpack.c.l.b16 %v201
    %v428 = vunpack.c.l.b16 %v202
    %v429 = vunpack.c.l.b16 %v203
    %v430 = vunpack.c.l.b16 %v204
    %v431 = vunpack.c.l.b16 %v205
    %v432 = vunpack.c.l.b16 %v206
    %v433 = vunpack.c.l.b16 %v207
    %v434 = vunpack.c.l.b16 %v208
    %v435 = vunpack.c.l.b16 %v209
    %v436 = vunpack.c.l.b16 %v210
    %v437 = vunpack.c.l.b16 %v211
    %v438 = vunpack.c.l.b16 %v212
    %v439 = vunpack.c.l.b16 %v213
    %v440 = vunpack.c.l.b16 %v214
    %v441 = vunpack.c.l.b16 %v215
    %v442 = vunpack.c.l.b16 %v216
    %v443 = vunpack.c.l.b16 %v217
    %v444 = vunpack.c.l.b16 %v218
    %v445 = vunpack.c.l.b16 %v219
    %v446 = vunpack.c.l.b16 %v220
    %v447 = vunpack.c.l.b16 %v221
    %v448 = vunpack.c.l.b16 %v222
    %v449 = vunpack.c.l.b16 %v223
    %v450 = vunpack.c.l.b16 %v224
    %v451 = vunpack.c.l.b16 %v225
    %v452 = vunpack.c.l.b16 %v226
    %v453 = vpack.c.b16 %v358, %v357
    %v454 = vpack.c.b16 %v360, %v359
    %v455 = vpack.c.b16 %v362, %v361
    %v456 = vpack.c.b16 %v364, %v363
    %v457 = vpack.c.b16 %v366, %v365
    %v458 = vpack.c.b16 %v368, %v367
    %v459 = vpack.c.b16 %v370, %v369
    %v460 = vpack.c.b16 %v372, %v371
    %v461 = vpack.c.b16 %v374, %v373
    %v462 = vpack.c.b16 %v376, %v375
    %v463 = vpack.c.b16 %v378, %v377
    %v464 = vpack.c.b16 %v380, %v379
    %v465 = vpack.c.b16 %v382, %v381
    %v466 = vpack.c.b16 %v384, %v383
    %v467 = vpack.c.b16 %v386, %v385
    %v468 = vpack.c.b16 %v388, %v387
    %v469 = vpack.c.b16 %v390, %v389
    %v470 = vpack.c.b16 %v392, %v391
    %v471 = vpack.c.b16 %v394, %v393
    %v472 = vpack.c.b16 %v396, %v395
    %v473 = vpack.c.b16 %v398, %v397
    %v474 = vpack.c.b16 %v400, %v399
    %v475 = vpack.c.b16 %v402, %v401
    %v476 = vpack.c.b16 %v404, %v403
    %v477 = vpack.c.b16 %v406, %v405
    %v478 = vpack.c.b16 %v408, %v407
    %v479 = vpack.c.b16 %v410, %v409
    %v480 = vpack.c.b16 %v412, %v411
    %v481 = vpack.c.b16 %v414, %v413
    %v482 = vpack.c.b16 %v416, %v415
    %v483 = vpack.c.b16 %v418, %v417
    %v484 = vpack.c.b16 %v420, %v419
    %v485 = vpack.c.b16 %v422, %v421
    %v486 = vpack.c.b16 %v424, %v423
    %v487 = vpack.c.b16 %v426, %v425
    %v488 = vpack.c.b16 %v428, %v427
    %v489 = vpack.c.b16 %v430, %v429
    %v490 = vpack.c.b16 %v432, %v431
    %v491 = vpack.c.b16 %v434, %v433
    %v492 = vpack.c.b16 %v436, %v435
    %v493 = vpack.c.b16 %v438, %v437
    %v494 = vpack.c.b16 %v440, %v439
    %v495 = vpack.c.b16 %v442, %v441
    %v496 = vpack.c.b16 %v444, %v443
    %v497 = vpack.c.b16 %v446, %v445
    %v498 = vpack.c.b16 %v448, %v447
    %v499 = vpack.c.b16 %v450, %v449
    %v500 = vpack.c.b16 %v452, %v451
    %549 = vmatprep.subr.bf16.mxu0 0
    %550 = vmatpush1.bf16.msra.mxu0 %v460
    %551 = vmatprep.subr.bf16.mxu0 0
    %552 = vmatpush1.bf16.msra.mxu0 %v459
    %553 = vmatprep.subr.bf16.mxu0 0
    %554 = vmatpush1.bf16.msra.mxu0 %v458
    %555 = vmatprep.subr.bf16.mxu0 0
    %556 = vmatpush1.bf16.msra.mxu0 %v457
    %557 = vmatprep.subr.bf16.mxu0 0
    %558 = vmatpush1.bf16.msra.mxu0 %v456
    %559 = vmatprep.subr.bf16.mxu0 0
    %560 = vmatpush1.bf16.msra.mxu0 %v455
    %561 = vmatprep.subr.bf16.mxu0 0
    %562 = vmatpush1.bf16.msra.mxu0 %v454
    %563 = vmatprep.subr.bf16.mxu0 0
    %564 = vmatpush1.bf16.msra.mxu0 %v453
    %565 = vmatprep.subr.bf16.mxu0 0
    %566 = vmatpush2.bf16.msra.mxu0 %v468
    %567 = vmatprep.subr.bf16.mxu0 0
    %568 = vmatpush2.bf16.msra.mxu0 %v467
    %569 = vmatprep.subr.bf16.mxu0 0
    %570 = vmatpush2.bf16.msra.mxu0 %v466
    %571 = vmatprep.subr.bf16.mxu0 0
    %572 = vmatpush2.bf16.msra.mxu0 %v465
    %573 = vmatprep.subr.bf16.mxu0 0
    %574 = vmatpush2.bf16.msra.mxu0 %v464
    %575 = vmatprep.subr.bf16.mxu0 0
    %576 = vmatpush2.bf16.msra.mxu0 %v463
    %577 = vmatprep.subr.bf16.mxu0 0
    %578 = vmatpush2.bf16.msra.mxu0 %v462
    %579 = vmatprep.subr.bf16.mxu0 0
    %580 = vmatpush2.bf16.msra.mxu0 %v461
    %581 = vmatprep.mubr.bf16.mxu0 %v250
    %582 = vmatmul.mubr.bf16.gmra.mxu0 %v249
    %v583 = vpop.f32.mrf.mxu0
    %v584 = vadd.f32 %v230, %v583
    %v585 = vpop.f32.mrf.mxu0
    %v586 = vpop.f32.mrf.mxu0
    %v587 = vadd.f32 %v230, %v586
    %v588 = vpop.f32.mrf.mxu0
    %589 = vdwg.mxu0
    %590 = vmatprep.subr.bf16.mxu0 0
    %591 = vmatpush1.bf16.msra.mxu0 %v476
    %592 = vmatprep.subr.bf16.mxu0 0
    %593 = vmatpush1.bf16.msra.mxu0 %v475
    %594 = vmatprep.subr.bf16.mxu0 0
    %595 = vmatpush1.bf16.msra.mxu0 %v474
    %596 = vmatprep.subr.bf16.mxu0 0
    %597 = vmatpush1.bf16.msra.mxu0 %v473
    %598 = vmatprep.subr.bf16.mxu0 0
    %599 = vmatpush1.bf16.msra.mxu0 %v472
    %600 = vmatprep.subr.bf16.mxu0 0
    %601 = vmatpush1.bf16.msra.mxu0 %v471
    %602 = vmatprep.subr.bf16.mxu0 0
    %603 = vmatpush1.bf16.msra.mxu0 %v470
    %604 = vmatprep.subr.bf16.mxu0 0
    %605 = vmatpush1.bf16.msra.mxu0 %v469
    %606 = vmatprep.subr.bf16.mxu0 0
    %607 = vmatpush2.bf16.msra.mxu0 %v484
    %608 = vmatprep.subr.bf16.mxu0 0
    %609 = vmatpush2.bf16.msra.mxu0 %v483
    %610 = vmatprep.subr.bf16.mxu0 0
    %611 = vmatpush2.bf16.msra.mxu0 %v482
    %612 = vmatprep.subr.bf16.mxu0 0
    %613 = vmatpush2.bf16.msra.mxu0 %v481
    %614 = vmatprep.subr.bf16.mxu0 0
    %615 = vmatpush2.bf16.msra.mxu0 %v480
    %616 = vmatprep.subr.bf16.mxu0 0
    %617 = vmatpush2.bf16.msra.mxu0 %v479
    %618 = vmatprep.subr.bf16.mxu0 0
    %619 = vmatpush2.bf16.msra.mxu0 %v478
    %620 = vmatprep.subr.bf16.mxu0 0
    %621 = vmatpush2.bf16.msra.mxu0 %v477
    %622 = vmatprep.mubr.bf16.mxu0 %v252
    %623 = vmatmul.mubr.bf16.gmra.mxu0 %v251
    %v624 = vpop.f32.mrf.mxu0
    %v625 = vadd.f32 %v584, %v624
    %v626 = vpop.f32.mrf.mxu0
    %v627 = vpop.f32.mrf.mxu0
    %v628 = vadd.f32 %v587, %v627
    %v629 = vpop.f32.mrf.mxu0
    %630 = vdwg.mxu0
    %631 = vmatprep.subr.bf16.mxu0 0
    %632 = vmatpush1.bf16.msra.mxu0 %v492
    %633 = vmatprep.subr.bf16.mxu0 0
    %634 = vmatpush1.bf16.msra.mxu0 %v491
    %635 = vmatprep.subr.bf16.mxu0 0
    %636 = vmatpush1.bf16.msra.mxu0 %v490
    %637 = vmatprep.subr.bf16.mxu0 0
    %638 = vmatpush1.bf16.msra.mxu0 %v489
    %639 = vmatprep.subr.bf16.mxu0 0
    %640 = vmatpush1.bf16.msra.mxu0 %v488
    %641 = vmatprep.subr.bf16.mxu0 0
    %642 = vmatpush1.bf16.msra.mxu0 %v487
    %643 = vmatprep.subr.bf16.mxu0 0
    %644 = vmatpush1.bf16.msra.mxu0 %v486
    %645 = vmatprep.subr.bf16.mxu0 0
    %646 = vmatpush1.bf16.msra.mxu0 %v485
    %647 = vmatprep.subr.bf16.mxu0 0
    %648 = vmatpush2.bf16.msra.mxu0 %v500
    %649 = vmatprep.subr.bf16.mxu0 0
    %650 = vmatpush2.bf16.msra.mxu0 %v499
    %651 = vmatprep.subr.bf16.mxu0 0
    %652 = vmatpush2.bf16.msra.mxu0 %v498
    %653 = vmatprep.subr.bf16.mxu0 0
    %654 = vmatpush2.bf16.msra.mxu0 %v497
    %655 = vmatprep.subr.bf16.mxu0 0
    %656 = vmatpush2.bf16.msra.mxu0 %v496
    %657 = vmatprep.subr.bf16.mxu0 0
    %658 = vmatpush2.bf16.msra.mxu0 %v495
    %659 = vmatprep.subr.bf16.mxu0 0
    %660 = vmatpush2.bf16.msra.mxu0 %v494
    %661 = vmatprep.subr.bf16.mxu0 0
    %662 = vmatpush2.bf16.msra.mxu0 %v493
    %663 = vmatprep.mubr.bf16.mxu0 %v254
    %664 = vmatmul.mubr.bf16.gmra.mxu0 %v253
    %v665 = vpop.f32.mrf.mxu0
    %v666 = vadd.f32 %v625, %v665
    %v667 = vpop.f32.mrf.mxu0
    %v668 = vpop.f32.mrf.mxu0
    %v669 = vadd.f32 %v628, %v668
    %v670 = vpop.f32.mrf.mxu0
    %671 = vdwg.mxu0
    %672 = vadd.xlane.f32.xlu0 %v666
    %v673 = vpop.xlane.xlu0 %672
    %674 = vadd.xlane.f32.xlu0 %v669
    %v675 = vpop.xlane.xlu0 %674
    %v676 = vmul.f32 %v666, %v666
    %v677 = vmul.f32 %v669, %v669
    %678 = vadd.xlane.f32.xlu0 %v676
    %v679 = vpop.xlane.xlu0 %678
    %680 = vadd.xlane.f32.xlu0 %v677
    %v681 = vpop.xlane.xlu0 %680
    %v682 = vmul.f32 %v673, 0.03125
    %v683 = vmul.f32 %v675, 0.03125
    %v684 = vmul.f32 %v679, 0.03125
    %v685 = vmul.f32 %v681, 0.03125
    %v686 = vmul.f32 %v682, %v682
    %v687 = vmul.f32 %v683, %v683
    %v688 = vsub.f32 %v684, %v686
    %v689 = vsub.f32 %v685, %v687
    %v690 = vadd.f32 %v688, 1e-05
    %v691 = vadd.f32 %v689, 1e-05
    %v692 = vrsqrt.pop %v690
    %v693 = vrsqrt.pop %v691
    %v694 = vsub.f32 %v666, %v682
    %v695 = vsub.f32 %v669, %v683
    %v696 = vmul.f32 %v694, %v692
    %v697 = vmul.f32 %v695, %v693
    %v698 = vlaneseq
    %v699 = vshrl.u32 %v698, 7
    %v700 = vsub.s32 1, %v699
    %v701 = vrot.slane %v124, %v700
    %v702 = vmul.f32 %v696, %v701
    %v703 = vmul.f32 %v697, %v701
    %v704 = vlaneseq
    %v705 = vshrl.u32 %v704, 7
    %v706 = vsub.s32 2, %v705
    %v707 = vrot.slane %v124, %v706
    %v708 = vadd.f32 %v702, %v707
    %v709 = vadd.f32 %v703, %v707
    %v710 = vmax.f32 %v708, 0.0
    %v711 = vmax.f32 %v709, 0.0
    %v712 = vld [vmem:[#allocation11] sm:$0x3f]
    %v713 = vpack.c.bf16 %v711, %v710
    %v714 = vld [vmem:[#allocation8] sm:$0xf]
    %v715 = vld [vmem:[#allocation8 + $0x4] sm:$0xf]
    %v716 = vld [vmem:[#allocation8 + $0x8] sm:$0xf]
    %v717 = vld [vmem:[#allocation8 + $0xc] sm:$0xf]
    %v718 = vld [vmem:[#allocation8 + $0x10] sm:$0xf]
    %v719 = vld [vmem:[#allocation8 + $0x14] sm:$0xf]
    %v720 = vld [vmem:[#allocation8 + $0x18] sm:$0xf]
    %v721 = vld [vmem:[#allocation8 + $0x1c] sm:$0xf]
    %v722 = vld [vmem:[#allocation8 + $0x20] sm:$0xf]
    %v723 = vld [vmem:[#allocation8 + $0x24] sm:$0xf]
    %v724 = vld [vmem:[#allocation8 + $0x28] sm:$0xf]
    %v725 = vld [vmem:[#allocation8 + $0x2c] sm:$0xf]
    %v726 = vld [vmem:[#allocation8 + $0x30] sm:$0xf]
    %v727 = vld [vmem:[#allocation8 + $0x34] sm:$0xf]
    %v728 = vld [vmem:[#allocation8 + $0x38] sm:$0xf]
    %v729 = vld [vmem:[#allocation8 + $0x3c] sm:$0xf]
    %v730 = vlaneseq
    %v731 = vshrl.u32 %v730, 7
    %v732 = vsub.s32 0, %v731
    %v733 = vrot.slane %v712, %v732
    %v750 = vunpack.c.l.b16 %v714
    %v751 = vunpack.c.l.b16 %v715
    %v752 = vunpack.c.l.b16 %v716
    %v753 = vunpack.c.l.b16 %v717
    %v754 = vunpack.c.l.b16 %v718
    %v755 = vunpack.c.l.b16 %v719
    %v756 = vunpack.c.l.b16 %v720
    %v757 = vunpack.c.l.b16 %v721
    %v758 = vunpack.c.l.b16 %v722
    %v759 = vunpack.c.l.b16 %v723
    %v760 = vunpack.c.l.b16 %v724
    %v761 = vunpack.c.l.b16 %v725
    %v762 = vunpack.c.l.b16 %v726
    %v763 = vunpack.c.l.b16 %v727
    %v764 = vunpack.c.l.b16 %v728
    %v765 = vunpack.c.l.b16 %v729
    %v766 = vpack.c.b16 %v751, %v750
    %v767 = vpack.c.b16 %v753, %v752
    %v768 = vpack.c.b16 %v755, %v754
    %v769 = vpack.c.b16 %v757, %v756
    %v770 = vpack.c.b16 %v759, %v758
    %v771 = vpack.c.b16 %v761, %v760
    %v772 = vpack.c.b16 %v763, %v762
    %v773 = vpack.c.b16 %v765, %v764
    %782 = vmatprep.subr.bf16.mxu0 0
    %783 = vmatpush1.bf16.msra.mxu0 %v773
    %784 = vmatprep.subr.bf16.mxu0 0
    %785 = vmatpush1.bf16.msra.mxu0 %v772
    %786 = vmatprep.subr.bf16.mxu0 0
    %787 = vmatpush1.bf16.msra.mxu0 %v771
    %788 = vmatprep.subr.bf16.mxu0 0
    %789 = vmatpush1.bf16.msra.mxu0 %v770
    %790 = vmatprep.subr.bf16.mxu0 0
    %791 = vmatpush1.bf16.msra.mxu0 %v769
    %792 = vmatprep.subr.bf16.mxu0 0
    %793 = vmatpush1.bf16.msra.mxu0 %v768
    %794 = vmatprep.subr.bf16.mxu0 0
    %795 = vmatpush1.bf16.msra.mxu0 %v767
    %796 = vmatprep.subr.bf16.mxu0 0
    %797 = vmatpush1.bf16.msra.mxu0 %v766
    %798 = vmatprep.subr.bf16.mxu0 0
    %799 = vmatpush2.bf16.msra.mxu0 0
    %800 = vmatprep.subr.bf16.mxu0 0
    %801 = vmatpush2.bf16.msra.mxu0 0
    %802 = vmatprep.subr.bf16.mxu0 0
    %803 = vmatpush2.bf16.msra.mxu0 0
    %804 = vmatprep.subr.bf16.mxu0 0
    %805 = vmatpush2.bf16.msra.mxu0 0
    %806 = vmatprep.subr.bf16.mxu0 0
    %807 = vmatpush2.bf16.msra.mxu0 0
    %808 = vmatprep.subr.bf16.mxu0 0
    %809 = vmatpush2.bf16.msra.mxu0 0
    %810 = vmatprep.subr.bf16.mxu0 0
    %811 = vmatpush2.bf16.msra.mxu0 0
    %812 = vmatprep.subr.bf16.mxu0 0
    %813 = vmatpush2.bf16.msra.mxu0 0
    %814 = vmatprep.mubr.bf16.mxu0 0
    %815 = vmatmul.mubr.bf16.gmra.mxu0 %v713
    %v816 = vpop.f32.mrf.mxu0
    %v817 = vadd.f32 %v733, %v816
    %v818 = vpop.f32.mrf.mxu0
    %v819 = vpop.f32.mrf.mxu0
    %v820 = vadd.f32 %v733, %v819
    %v821 = vpop.f32.mrf.mxu0
    %822 = vdwg.mxu0
    %823 = vadd.xlane.f32.xlu0 %v817
    %v824 = vpop.xlane.xlu0 %823
    %825 = vadd.xlane.f32.xlu0 %v820
    %v826 = vpop.xlane.xlu0 %825
    %v827 = vmul.f32 %v817, %v817
    %v828 = vmul.f32 %v820, %v820
    %829 = vadd.xlane.f32.xlu0 %v827
    %v830 = vpop.xlane.xlu0 %829
    %831 = vadd.xlane.f32.xlu0 %v828
    %v832 = vpop.xlane.xlu0 %831
    %v833 = vmul.f32 %v824, 0.03125
    %v834 = vmul.f32 %v826, 0.03125
    %v835 = vmul.f32 %v830, 0.03125
    %v836 = vmul.f32 %v832, 0.03125
    %v837 = vmul.f32 %v833, %v833
    %v838 = vmul.f32 %v834, %v834
    %v839 = vsub.f32 %v835, %v837
    %v840 = vsub.f32 %v836, %v838
    %v841 = vadd.f32 %v839, 1e-05
    %v842 = vadd.f32 %v840, 1e-05
    %v843 = vrsqrt.pop %v841
    %v844 = vrsqrt.pop %v842
    %v845 = vsub.f32 %v817, %v833
    %v846 = vsub.f32 %v820, %v834
    %v847 = vmul.f32 %v845, %v843
    %v848 = vmul.f32 %v846, %v844
    %v849 = vlaneseq
    %v850 = vshrl.u32 %v849, 7
    %v851 = vsub.s32 1, %v850
    %v852 = vrot.slane %v712, %v851
    %v853 = vmul.f32 %v847, %v852
    %v854 = vmul.f32 %v848, %v852
    %v855 = vlaneseq
    %v856 = vshrl.u32 %v855, 7
    %v857 = vsub.s32 2, %v856
    %v858 = vrot.slane %v712, %v857
    %v859 = vadd.f32 %v853, %v858
    %v860 = vadd.f32 %v854, %v858
    %v861 = vmax.f32 %v859, 0.0
    %v862 = vmax.f32 %v860, 0.0
    %v863 = vpack.c.bf16 %v862, %v861
    %v864 = vld [vmem:[#allocation10] sm:$0xf]
    %v865 = vld [vmem:[#allocation10 + $0x4] sm:$0xf]
    %v866 = vld [vmem:[#allocation10 + $0x8] sm:$0xf]
    %v867 = vld [vmem:[#allocation10 + $0xc] sm:$0xf]
    %v868 = vld [vmem:[#allocation10 + $0x10] sm:$0xf]
    %v869 = vld [vmem:[#allocation10 + $0x14] sm:$0xf]
    %v870 = vld [vmem:[#allocation10 + $0x18] sm:$0xf]
    %v871 = vld [vmem:[#allocation10 + $0x1c] sm:$0xf]
    %v872 = vld [vmem:[#allocation10 + $0x20] sm:$0xf]
    %v873 = vld [vmem:[#allocation10 + $0x24] sm:$0xf]
    %v874 = vld [vmem:[#allocation10 + $0x28] sm:$0xf]
    %v875 = vld [vmem:[#allocation10 + $0x2c] sm:$0xf]
    %v876 = vld [vmem:[#allocation10 + $0x30] sm:$0xf]
    %v877 = vld [vmem:[#allocation10 + $0x34] sm:$0xf]
    %v878 = vld [vmem:[#allocation10 + $0x38] sm:$0xf]
    %v879 = vld [vmem:[#allocation10 + $0x3c] sm:$0xf]
    %v880 = vlaneseq
    %v881 = vshrl.u32 %v880, 7
    %v882 = vsub.s32 3, %v881
    %v883 = vrot.slane %v712, %v882
    %v900 = vunpack.c.l.b16 %v864
    %v901 = vunpack.c.l.b16 %v865
    %v902 = vunpack.c.l.b16 %v866
    %v903 = vunpack.c.l.b16 %v867
    %v904 = vunpack.c.l.b16 %v868
    %v905 = vunpack.c.l.b16 %v869
    %v906 = vunpack.c.l.b16 %v870
    %v907 = vunpack.c.l.b16 %v871
    %v908 = vunpack.c.l.b16 %v872
    %v909 = vunpack.c.l.b16 %v873
    %v910 = vunpack.c.l.b16 %v874
    %v911 = vunpack.c.l.b16 %v875
    %v912 = vunpack.c.l.b16 %v876
    %v913 = vunpack.c.l.b16 %v877
    %v914 = vunpack.c.l.b16 %v878
    %v915 = vunpack.c.l.b16 %v879
    %v916 = vpack.c.b16 %v901, %v900
    %v917 = vpack.c.b16 %v903, %v902
    %v918 = vpack.c.b16 %v905, %v904
    %v919 = vpack.c.b16 %v907, %v906
    %v920 = vpack.c.b16 %v909, %v908
    %v921 = vpack.c.b16 %v911, %v910
    %v922 = vpack.c.b16 %v913, %v912
    %v923 = vpack.c.b16 %v915, %v914
    %932 = vmatprep.subr.bf16.mxu0 0
    %933 = vmatpush1.bf16.msra.mxu0 %v923
    %934 = vmatprep.subr.bf16.mxu0 0
    %935 = vmatpush1.bf16.msra.mxu0 %v922
    %936 = vmatprep.subr.bf16.mxu0 0
    %937 = vmatpush1.bf16.msra.mxu0 %v921
    %938 = vmatprep.subr.bf16.mxu0 0
    %939 = vmatpush1.bf16.msra.mxu0 %v920
    %940 = vmatprep.subr.bf16.mxu0 0
    %941 = vmatpush1.bf16.msra.mxu0 %v919
    %942 = vmatprep.subr.bf16.mxu0 0
    %943 = vmatpush1.bf16.msra.mxu0 %v918
    %944 = vmatprep.subr.bf16.mxu0 0
    %945 = vmatpush1.bf16.msra.mxu0 %v917
    %946 = vmatprep.subr.bf16.mxu0 0
    %947 = vmatpush1.bf16.msra.mxu0 %v916
    %948 = vmatprep.subr.bf16.mxu0 0
    %949 = vmatpush2.bf16.msra.mxu0 0
    %950 = vmatprep.subr.bf16.mxu0 0
    %951 = vmatpush2.bf16.msra.mxu0 0
    %952 = vmatprep.subr.bf16.mxu0 0
    %953 = vmatpush2.bf16.msra.mxu0 0
    %954 = vmatprep.subr.bf16.mxu0 0
    %955 = vmatpush2.bf16.msra.mxu0 0
    %956 = vmatprep.subr.bf16.mxu0 0
    %957 = vmatpush2.bf16.msra.mxu0 0
    %958 = vmatprep.subr.bf16.mxu0 0
    %959 = vmatpush2.bf16.msra.mxu0 0
    %960 = vmatprep.subr.bf16.mxu0 0
    %961 = vmatpush2.bf16.msra.mxu0 0
    %962 = vmatprep.subr.bf16.mxu0 0
    %963 = vmatpush2.bf16.msra.mxu0 0
    %964 = vmatprep.mubr.bf16.mxu0 0
    %965 = vmatmul.mubr.bf16.gmra.mxu0 %v863
    %v966 = vpop.f32.mrf.mxu0
    %v967 = vadd.f32 %v883, %v966
    %v968 = vpop.f32.mrf.mxu0
    %v969 = vpop.f32.mrf.mxu0
    %v970 = vadd.f32 %v883, %v969
    %v971 = vpop.f32.mrf.mxu0
    %972 = vdwg.mxu0
    %973 = vadd.xlane.f32.xlu0 %v967
    %v974 = vpop.xlane.xlu0 %973
    %975 = vadd.xlane.f32.xlu0 %v970
    %v976 = vpop.xlane.xlu0 %975
    %v977 = vmul.f32 %v967, %v967
    %v978 = vmul.f32 %v970, %v970
    %979 = vadd.xlane.f32.xlu0 %v977
    %v980 = vpop.xlane.xlu0 %979
    %981 = vadd.xlane.f32.xlu0 %v978
    %v982 = vpop.xlane.xlu0 %981
    %v983 = vmul.f32 %v974, 0.03125
    %v984 = vmul.f32 %v976, 0.03125
    %v985 = vmul.f32 %v980, 0.03125
    %v986 = vmul.f32 %v982, 0.03125
    %v987 = vmul.f32 %v983, %v983
    %v988 = vmul.f32 %v984, %v984
    %v989 = vsub.f32 %v985, %v987
    %v990 = vsub.f32 %v986, %v988
    %v991 = vadd.f32 %v989, 1e-05
    %v992 = vadd.f32 %v990, 1e-05
    %v993 = vrsqrt.pop %v991
    %v994 = vrsqrt.pop %v992
    %v995 = vsub.f32 %v967, %v983
    %v996 = vsub.f32 %v970, %v984
    %v997 = vmul.f32 %v995, %v993
    %v998 = vmul.f32 %v996, %v994
    %v999 = vlaneseq
    %v1000 = vshrl.u32 %v999, 7
    %v1001 = vsub.s32 4, %v1000
    %v1002 = vrot.slane %v712, %v1001
    %v1003 = vmul.f32 %v997, %v1002
    %v1004 = vmul.f32 %v998, %v1002
    %v1005 = vlaneseq
    %v1006 = vshrl.u32 %v1005, 7
    %v1007 = vsub.s32 5, %v1006
    %v1008 = vrot.slane %v712, %v1007
    %v1009 = vadd.f32 %v1003, %v1008
    %v1010 = vadd.f32 %v1004, %v1008
    %v1011 = vadd.f32 %v1009, %v710
    %v1012 = vadd.f32 %v1010, %v711
    %v1013 = vmax.f32 %v1011, 0.0
    %v1014 = vmax.f32 %v1012, 0.0
    %s1015 = scalar_lea.vmem [#allocation11], 8
    %v1016 = vld [vmem:[%s1015] sm:$0x3f]
    %v1017 = vpack.c.bf16 %v1014, %v1013
    %s1018 = scalar_lea.vmem [#allocation8], 64
    %v1019 = vld [vmem:[%s1018] sm:$0xf]
    %v1020 = vld [vmem:[%s1018 + $0x4] sm:$0xf]
    %v1021 = vld [vmem:[%s1018 + $0x8] sm:$0xf]
    %v1022 = vld [vmem:[%s1018 + $0xc] sm:$0xf]
    %v1023 = vld [vmem:[%s1018 + $0x10] sm:$0xf]
    %v1024 = vld [vmem:[%s1018 + $0x14] sm:$0xf]
    %v1025 = vld [vmem:[%s1018 + $0x18] sm:$0xf]
    %v1026 = vld [vmem:[%s1018 + $0x1c] sm:$0xf]
    %v1027 = vld [vmem:[%s1018 + $0x20] sm:$0xf]
    %v1028 = vld [vmem:[%s1018 + $0x24] sm:$0xf]
    %v1029 = vld [vmem:[%s1018 + $0x28] sm:$0xf]
    %v1030 = vld [vmem:[%s1018 + $0x2c] sm:$0xf]
    %v1031 = vld [vmem:[%s1018 + $0x30] sm:$0xf]
    %v1032 = vld [vmem:[%s1018 + $0x34] sm:$0xf]
    %v1033 = vld [vmem:[%s1018 + $0x38] sm:$0xf]
    %v1034 = vld [vmem:[%s1018 + $0x3c] sm:$0xf]
    %v1035 = vlaneseq
    %v1036 = vshrl.u32 %v1035, 7
    %v1037 = vsub.s32 0, %v1036
    %v1038 = vrot.slane %v1016, %v1037
    %v1055 = vunpack.c.l.b16 %v1019
    %v1056 = vunpack.c.l.b16 %v1020
    %v1057 = vunpack.c.l.b16 %v1021
    %v1058 = vunpack.c.l.b16 %v1022
    %v1059 = vunpack.c.l.b16 %v1023
    %v1060 = vunpack.c.l.b16 %v1024
    %v1061 = vunpack.c.l.b16 %v1025
    %v1062 = vunpack.c.l.b16 %v1026
    %v1063 = vunpack.c.l.b16 %v1027
    %v1064 = vunpack.c.l.b16 %v1028
    %v1065 = vunpack.c.l.b16 %v1029
    %v1066 = vunpack.c.l.b16 %v1030
    %v1067 = vunpack.c.l.b16 %v1031
    %v1068 = vunpack.c.l.b16 %v1032
    %v1069 = vunpack.c.l.b16 %v1033
    %v1070 = vunpack.c.l.b16 %v1034
    %v1071 = vpack.c.b16 %v1056, %v1055
    %v1072 = vpack.c.b16 %v1058, %v1057
    %v1073 = vpack.c.b16 %v1060, %v1059
    %v1074 = vpack.c.b16 %v1062, %v1061
    %v1075 = vpack.c.b16 %v1064, %v1063
    %v1076 = vpack.c.b16 %v1066, %v1065
    %v1077 = vpack.c.b16 %v1068, %v1067
    %v1078 = vpack.c.b16 %v1070, %v1069
    %1087 = vmatprep.subr.bf16.mxu0 0
    %1088 = vmatpush1.bf16.msra.mxu0 %v1078
    %1089 = vmatprep.subr.bf16.mxu0 0
    %1090 = vmatpush1.bf16.msra.mxu0 %v1077
    %1091 = vmatprep.subr.bf16.mxu0 0
    %1092 = vmatpush1.bf16.msra.mxu0 %v1076
    %1093 = vmatprep.subr.bf16.mxu0 0
    %1094 = vmatpush1.bf16.msra.mxu0 %v1075
    %1095 = vmatprep.subr.bf16.mxu0 0
    %1096 = vmatpush1.bf16.msra.mxu0 %v1074
    %1097 = vmatprep.subr.bf16.mxu0 0
    %1098 = vmatpush1.bf16.msra.mxu0 %v1073
    %1099 = vmatprep.subr.bf16.mxu0 0
    %1100 = vmatpush1.bf16.msra.mxu0 %v1072
    %1101 = vmatprep.subr.bf16.mxu0 0
    %1102 = vmatpush1.bf16.msra.mxu0 %v1071
    %1103 = vmatprep.subr.bf16.mxu0 0
    %1104 = vmatpush2.bf16.msra.mxu0 0
    %1105 = vmatprep.subr.bf16.mxu0 0
    %1106 = vmatpush2.bf16.msra.mxu0 0
    %1107 = vmatprep.subr.bf16.mxu0 0
    %1108 = vmatpush2.bf16.msra.mxu0 0
    %1109 = vmatprep.subr.bf16.mxu0 0
    %1110 = vmatpush2.bf16.msra.mxu0 0
    %1111 = vmatprep.subr.bf16.mxu0 0
    %1112 = vmatpush2.bf16.msra.mxu0 0
    %1113 = vmatprep.subr.bf16.mxu0 0
    %1114 = vmatpush2.bf16.msra.mxu0 0
    %1115 = vmatprep.subr.bf16.mxu0 0
    %1116 = vmatpush2.bf16.msra.mxu0 0
    %1117 = vmatprep.subr.bf16.mxu0 0
    %1118 = vmatpush2.bf16.msra.mxu0 0
    %1119 = vmatprep.mubr.bf16.mxu0 0
    %1120 = vmatmul.mubr.bf16.gmra.mxu0 %v1017
    %v1121 = vpop.f32.mrf.mxu0
    %v1122 = vadd.f32 %v1038, %v1121
    %v1123 = vpop.f32.mrf.mxu0
    %v1124 = vpop.f32.mrf.mxu0
    %v1125 = vadd.f32 %v1038, %v1124
    %v1126 = vpop.f32.mrf.mxu0
    %1127 = vdwg.mxu0
    %1128 = vadd.xlane.f32.xlu0 %v1122
    %v1129 = vpop.xlane.xlu0 %1128
    %1130 = vadd.xlane.f32.xlu0 %v1125
    %v1131 = vpop.xlane.xlu0 %1130
    %v1132 = vmul.f32 %v1122, %v1122
    %v1133 = vmul.f32 %v1125, %v1125
    %1134 = vadd.xlane.f32.xlu0 %v1132
    %v1135 = vpop.xlane.xlu0 %1134
    %1136 = vadd.xlane.f32.xlu0 %v1133
    %v1137 = vpop.xlane.xlu0 %1136
    %v1138 = vmul.f32 %v1129, 0.03125
    %v1139 = vmul.f32 %v1131, 0.03125
    %v1140 = vmul.f32 %v1135, 0.03125
    %v1141 = vmul.f32 %v1137, 0.03125
    %v1142 = vmul.f32 %v1138, %v1138
    %v1143 = vmul.f32 %v1139, %v1139
    %v1144 = vsub.f32 %v1140, %v1142
    %v1145 = vsub.f32 %v1141, %v1143
    %v1146 = vadd.f32 %v1144, 1e-05
    %v1147 = vadd.f32 %v1145, 1e-05
    %v1148 = vrsqrt.pop %v1146
    %v1149 = vrsqrt.pop %v1147
    %v1150 = vsub.f32 %v1122, %v1138
    %v1151 = vsub.f32 %v1125, %v1139
    %v1152 = vmul.f32 %v1150, %v1148
    %v1153 = vmul.f32 %v1151, %v1149
    %v1154 = vlaneseq
    %v1155 = vshrl.u32 %v1154, 7
    %v1156 = vsub.s32 1, %v1155
    %v1157 = vrot.slane %v1016, %v1156
    %v1158 = vmul.f32 %v1152, %v1157
    %v1159 = vmul.f32 %v1153, %v1157
    %v1160 = vlaneseq
    %v1161 = vshrl.u32 %v1160, 7
    %v1162 = vsub.s32 2, %v1161
    %v1163 = vrot.slane %v1016, %v1162
    %v1164 = vadd.f32 %v1158, %v1163
    %v1165 = vadd.f32 %v1159, %v1163
    %v1166 = vmax.f32 %v1164, 0.0
    %v1167 = vmax.f32 %v1165, 0.0
    %v1168 = vpack.c.bf16 %v1167, %v1166
    %s1169 = scalar_lea.vmem [#allocation10], 64
    %v1170 = vld [vmem:[%s1169] sm:$0xf]
    %v1171 = vld [vmem:[%s1169 + $0x4] sm:$0xf]
    %v1172 = vld [vmem:[%s1169 + $0x8] sm:$0xf]
    %v1173 = vld [vmem:[%s1169 + $0xc] sm:$0xf]
    %v1174 = vld [vmem:[%s1169 + $0x10] sm:$0xf]
    %v1175 = vld [vmem:[%s1169 + $0x14] sm:$0xf]
    %v1176 = vld [vmem:[%s1169 + $0x18] sm:$0xf]
    %v1177 = vld [vmem:[%s1169 + $0x1c] sm:$0xf]
    %v1178 = vld [vmem:[%s1169 + $0x20] sm:$0xf]
    %v1179 = vld [vmem:[%s1169 + $0x24] sm:$0xf]
    %v1180 = vld [vmem:[%s1169 + $0x28] sm:$0xf]
    %v1181 = vld [vmem:[%s1169 + $0x2c] sm:$0xf]
    %v1182 = vld [vmem:[%s1169 + $0x30] sm:$0xf]
    %v1183 = vld [vmem:[%s1169 + $0x34] sm:$0xf]
    %v1184 = vld [vmem:[%s1169 + $0x38] sm:$0xf]
    %v1185 = vld [vmem:[%s1169 + $0x3c] sm:$0xf]
    %v1186 = vlaneseq
    %v1187 = vshrl.u32 %v1186, 7
    %v1188 = vsub.s32 3, %v1187
    %v1189 = vrot.slane %v1016, %v1188
    %v1206 = vunpack.c.l.b16 %v1170
    %v1207 = vunpack.c.l.b16 %v1171
    %v1208 = vunpack.c.l.b16 %v1172
    %v1209 = vunpack.c.l.b16 %v1173
    %v1210 = vunpack.c.l.b16 %v1174
    %v1211 = vunpack.c.l.b16 %v1175
    %v1212 = vunpack.c.l.b16 %v1176
    %v1213 = vunpack.c.l.b16 %v1177
    %v1214 = vunpack.c.l.b16 %v1178
    %v1215 = vunpack.c.l.b16 %v1179
    %v1216 = vunpack.c.l.b16 %v1180
    %v1217 = vunpack.c.l.b16 %v1181
    %v1218 = vunpack.c.l.b16 %v1182
    %v1219 = vunpack.c.l.b16 %v1183
    %v1220 = vunpack.c.l.b16 %v1184
    %v1221 = vunpack.c.l.b16 %v1185
    %v1222 = vpack.c.b16 %v1207, %v1206
    %v1223 = vpack.c.b16 %v1209, %v1208
    %v1224 = vpack.c.b16 %v1211, %v1210
    %v1225 = vpack.c.b16 %v1213, %v1212
    %v1226 = vpack.c.b16 %v1215, %v1214
    %v1227 = vpack.c.b16 %v1217, %v1216
    %v1228 = vpack.c.b16 %v1219, %v1218
    %v1229 = vpack.c.b16 %v1221, %v1220
    %1238 = vmatprep.subr.bf16.mxu0 0
    %1239 = vmatpush1.bf16.msra.mxu0 %v1229
    %1240 = vmatprep.subr.bf16.mxu0 0
    %1241 = vmatpush1.bf16.msra.mxu0 %v1228
    %1242 = vmatprep.subr.bf16.mxu0 0
    %1243 = vmatpush1.bf16.msra.mxu0 %v1227
    %1244 = vmatprep.subr.bf16.mxu0 0
    %1245 = vmatpush1.bf16.msra.mxu0 %v1226
    %1246 = vmatprep.subr.bf16.mxu0 0
    %1247 = vmatpush1.bf16.msra.mxu0 %v1225
    %1248 = vmatprep.subr.bf16.mxu0 0
    %1249 = vmatpush1.bf16.msra.mxu0 %v1224
    %1250 = vmatprep.subr.bf16.mxu0 0
    %1251 = vmatpush1.bf16.msra.mxu0 %v1223
    %1252 = vmatprep.subr.bf16.mxu0 0
    %1253 = vmatpush1.bf16.msra.mxu0 %v1222
    %1254 = vmatprep.subr.bf16.mxu0 0
    %1255 = vmatpush2.bf16.msra.mxu0 0
    %1256 = vmatprep.subr.bf16.mxu0 0
    %1257 = vmatpush2.bf16.msra.mxu0 0
    %1258 = vmatprep.subr.bf16.mxu0 0
    %1259 = vmatpush2.bf16.msra.mxu0 0
    %1260 = vmatprep.subr.bf16.mxu0 0
    %1261 = vmatpush2.bf16.msra.mxu0 0
    %1262 = vmatprep.subr.bf16.mxu0 0
    %1263 = vmatpush2.bf16.msra.mxu0 0
    %1264 = vmatprep.subr.bf16.mxu0 0
    %1265 = vmatpush2.bf16.msra.mxu0 0
    %1266 = vmatprep.subr.bf16.mxu0 0
    %1267 = vmatpush2.bf16.msra.mxu0 0
    %1268 = vmatprep.subr.bf16.mxu0 0
    %1269 = vmatpush2.bf16.msra.mxu0 0
    %1270 = vmatprep.mubr.bf16.mxu0 0
    %1271 = vmatmul.mubr.bf16.gmra.mxu0 %v1168
    %v1272 = vpop.f32.mrf.mxu0
    %v1273 = vadd.f32 %v1189, %v1272
    %v1274 = vpop.f32.mrf.mxu0
    %v1275 = vpop.f32.mrf.mxu0
    %v1276 = vadd.f32 %v1189, %v1275
    %v1277 = vpop.f32.mrf.mxu0
    %1278 = vdwg.mxu0
    %1279 = vadd.xlane.f32.xlu0 %v1273
    %v1280 = vpop.xlane.xlu0 %1279
    %1281 = vadd.xlane.f32.xlu0 %v1276
    %v1282 = vpop.xlane.xlu0 %1281
    %v1283 = vmul.f32 %v1273, %v1273
    %v1284 = vmul.f32 %v1276, %v1276
    %1285 = vadd.xlane.f32.xlu0 %v1283
    %v1286 = vpop.xlane.xlu0 %1285
    %1287 = vadd.xlane.f32.xlu0 %v1284
    %v1288 = vpop.xlane.xlu0 %1287
    %v1289 = vmul.f32 %v1280, 0.03125
    %v1290 = vmul.f32 %v1282, 0.03125
    %v1291 = vmul.f32 %v1286, 0.03125
    %v1292 = vmul.f32 %v1288, 0.03125
    %v1293 = vmul.f32 %v1289, %v1289
    %v1294 = vmul.f32 %v1290, %v1290
    %v1295 = vsub.f32 %v1291, %v1293
    %v1296 = vsub.f32 %v1292, %v1294
    %v1297 = vadd.f32 %v1295, 1e-05
    %v1298 = vadd.f32 %v1296, 1e-05
    %v1299 = vrsqrt.pop %v1297
    %v1300 = vrsqrt.pop %v1298
    %v1301 = vsub.f32 %v1273, %v1289
    %v1302 = vsub.f32 %v1276, %v1290
    %v1303 = vmul.f32 %v1301, %v1299
    %v1304 = vmul.f32 %v1302, %v1300
    %v1305 = vlaneseq
    %v1306 = vshrl.u32 %v1305, 7
    %v1307 = vsub.s32 4, %v1306
    %v1308 = vrot.slane %v1016, %v1307
    %v1309 = vmul.f32 %v1303, %v1308
    %v1310 = vmul.f32 %v1304, %v1308
    %v1311 = vlaneseq
    %v1312 = vshrl.u32 %v1311, 7
    %v1313 = vsub.s32 5, %v1312
    %v1314 = vrot.slane %v1016, %v1313
    %v1315 = vadd.f32 %v1309, %v1314
    %v1316 = vadd.f32 %v1310, %v1314
    %v1317 = vadd.f32 %v1315, %v1013
    %v1318 = vadd.f32 %v1316, %v1014
    %v1319 = vmax.f32 %v1317, 0.0
    %v1320 = vmax.f32 %v1318, 0.0
    %s1321 = scalar_lea.vmem [#allocation11], 16
    %v1322 = vld [vmem:[%s1321] sm:$0x3f]
    %v1323 = vpack.c.bf16 %v1320, %v1319
    %s1324 = scalar_lea.vmem [#allocation8], 128
    %v1325 = vld [vmem:[%s1324] sm:$0xf]
    %v1326 = vld [vmem:[%s1324 + $0x4] sm:$0xf]
    %v1327 = vld [vmem:[%s1324 + $0x8] sm:$0xf]
    %v1328 = vld [vmem:[%s1324 + $0xc] sm:$0xf]
    %v1329 = vld [vmem:[%s1324 + $0x10] sm:$0xf]
    %v1330 = vld [vmem:[%s1324 + $0x14] sm:$0xf]
    %v1331 = vld [vmem:[%s1324 + $0x18] sm:$0xf]
    %v1332 = vld [vmem:[%s1324 + $0x1c] sm:$0xf]
    %v1333 = vld [vmem:[%s1324 + $0x20] sm:$0xf]
    %v1334 = vld [vmem:[%s1324 + $0x24] sm:$0xf]
    %v1335 = vld [vmem:[%s1324 + $0x28] sm:$0xf]
    %v1336 = vld [vmem:[%s1324 + $0x2c] sm:$0xf]
    %v1337 = vld [vmem:[%s1324 + $0x30] sm:$0xf]
    %v1338 = vld [vmem:[%s1324 + $0x34] sm:$0xf]
    %v1339 = vld [vmem:[%s1324 + $0x38] sm:$0xf]
    %v1340 = vld [vmem:[%s1324 + $0x3c] sm:$0xf]
    %v1341 = vlaneseq
    %v1342 = vshrl.u32 %v1341, 7
    %v1343 = vsub.s32 0, %v1342
    %v1344 = vrot.slane %v1322, %v1343
    %v1361 = vunpack.c.l.b16 %v1325
    %v1362 = vunpack.c.l.b16 %v1326
    %v1363 = vunpack.c.l.b16 %v1327
    %v1364 = vunpack.c.l.b16 %v1328
    %v1365 = vunpack.c.l.b16 %v1329
    %v1366 = vunpack.c.l.b16 %v1330
    %v1367 = vunpack.c.l.b16 %v1331
    %v1368 = vunpack.c.l.b16 %v1332
    %v1369 = vunpack.c.l.b16 %v1333
    %v1370 = vunpack.c.l.b16 %v1334
    %v1371 = vunpack.c.l.b16 %v1335
    %v1372 = vunpack.c.l.b16 %v1336
    %v1373 = vunpack.c.l.b16 %v1337
    %v1374 = vunpack.c.l.b16 %v1338
    %v1375 = vunpack.c.l.b16 %v1339
    %v1376 = vunpack.c.l.b16 %v1340
    %v1377 = vpack.c.b16 %v1362, %v1361
    %v1378 = vpack.c.b16 %v1364, %v1363
    %v1379 = vpack.c.b16 %v1366, %v1365
    %v1380 = vpack.c.b16 %v1368, %v1367
    %v1381 = vpack.c.b16 %v1370, %v1369
    %v1382 = vpack.c.b16 %v1372, %v1371
    %v1383 = vpack.c.b16 %v1374, %v1373
    %v1384 = vpack.c.b16 %v1376, %v1375
    %1393 = vmatprep.subr.bf16.mxu0 0
    %1394 = vmatpush1.bf16.msra.mxu0 %v1384
    %1395 = vmatprep.subr.bf16.mxu0 0
    %1396 = vmatpush1.bf16.msra.mxu0 %v1383
    %1397 = vmatprep.subr.bf16.mxu0 0
    %1398 = vmatpush1.bf16.msra.mxu0 %v1382
    %1399 = vmatprep.subr.bf16.mxu0 0
    %1400 = vmatpush1.bf16.msra.mxu0 %v1381
    %1401 = vmatprep.subr.bf16.mxu0 0
    %1402 = vmatpush1.bf16.msra.mxu0 %v1380
    %1403 = vmatprep.subr.bf16.mxu0 0
    %1404 = vmatpush1.bf16.msra.mxu0 %v1379
    %1405 = vmatprep.subr.bf16.mxu0 0
    %1406 = vmatpush1.bf16.msra.mxu0 %v1378
    %1407 = vmatprep.subr.bf16.mxu0 0
    %1408 = vmatpush1.bf16.msra.mxu0 %v1377
    %1409 = vmatprep.subr.bf16.mxu0 0
    %1410 = vmatpush2.bf16.msra.mxu0 0
    %1411 = vmatprep.subr.bf16.mxu0 0
    %1412 = vmatpush2.bf16.msra.mxu0 0
    %1413 = vmatprep.subr.bf16.mxu0 0
    %1414 = vmatpush2.bf16.msra.mxu0 0
    %1415 = vmatprep.subr.bf16.mxu0 0
    %1416 = vmatpush2.bf16.msra.mxu0 0
    %1417 = vmatprep.subr.bf16.mxu0 0
    %1418 = vmatpush2.bf16.msra.mxu0 0
    %1419 = vmatprep.subr.bf16.mxu0 0
    %1420 = vmatpush2.bf16.msra.mxu0 0
    %1421 = vmatprep.subr.bf16.mxu0 0
    %1422 = vmatpush2.bf16.msra.mxu0 0
    %1423 = vmatprep.subr.bf16.mxu0 0
    %1424 = vmatpush2.bf16.msra.mxu0 0
    %1425 = vmatprep.mubr.bf16.mxu0 0
    %1426 = vmatmul.mubr.bf16.gmra.mxu0 %v1323
    %v1427 = vpop.f32.mrf.mxu0
    %v1428 = vadd.f32 %v1344, %v1427
    %v1429 = vpop.f32.mrf.mxu0
    %v1430 = vpop.f32.mrf.mxu0
    %v1431 = vadd.f32 %v1344, %v1430
    %v1432 = vpop.f32.mrf.mxu0
    %1433 = vdwg.mxu0
    %1434 = vadd.xlane.f32.xlu0 %v1428
    %v1435 = vpop.xlane.xlu0 %1434
    %1436 = vadd.xlane.f32.xlu0 %v1431
    %v1437 = vpop.xlane.xlu0 %1436
    %v1438 = vmul.f32 %v1428, %v1428
    %v1439 = vmul.f32 %v1431, %v1431
    %1440 = vadd.xlane.f32.xlu0 %v1438
    %v1441 = vpop.xlane.xlu0 %1440
    %1442 = vadd.xlane.f32.xlu0 %v1439
    %v1443 = vpop.xlane.xlu0 %1442
    %v1444 = vmul.f32 %v1435, 0.03125
    %v1445 = vmul.f32 %v1437, 0.03125
    %v1446 = vmul.f32 %v1441, 0.03125
    %v1447 = vmul.f32 %v1443, 0.03125
    %v1448 = vmul.f32 %v1444, %v1444
    %v1449 = vmul.f32 %v1445, %v1445
    %v1450 = vsub.f32 %v1446, %v1448
    %v1451 = vsub.f32 %v1447, %v1449
    %v1452 = vadd.f32 %v1450, 1e-05
    %v1453 = vadd.f32 %v1451, 1e-05
    %v1454 = vrsqrt.pop %v1452
    %v1455 = vrsqrt.pop %v1453
    %v1456 = vsub.f32 %v1428, %v1444
    %v1457 = vsub.f32 %v1431, %v1445
    %v1458 = vmul.f32 %v1456, %v1454
    %v1459 = vmul.f32 %v1457, %v1455
    %v1460 = vlaneseq
    %v1461 = vshrl.u32 %v1460, 7
    %v1462 = vsub.s32 1, %v1461
    %v1463 = vrot.slane %v1322, %v1462
    %v1464 = vmul.f32 %v1458, %v1463
    %v1465 = vmul.f32 %v1459, %v1463
    %v1466 = vlaneseq
    %v1467 = vshrl.u32 %v1466, 7
    %v1468 = vsub.s32 2, %v1467
    %v1469 = vrot.slane %v1322, %v1468
    %v1470 = vadd.f32 %v1464, %v1469
    %v1471 = vadd.f32 %v1465, %v1469
    %v1472 = vmax.f32 %v1470, 0.0
    %v1473 = vmax.f32 %v1471, 0.0
    %v1474 = vpack.c.bf16 %v1473, %v1472
    %s1475 = scalar_lea.vmem [#allocation10], 128
    %v1476 = vld [vmem:[%s1475] sm:$0xf]
    %v1477 = vld [vmem:[%s1475 + $0x4] sm:$0xf]
    %v1478 = vld [vmem:[%s1475 + $0x8] sm:$0xf]
    %v1479 = vld [vmem:[%s1475 + $0xc] sm:$0xf]
    %v1480 = vld [vmem:[%s1475 + $0x10] sm:$0xf]
    %v1481 = vld [vmem:[%s1475 + $0x14] sm:$0xf]
    %v1482 = vld [vmem:[%s1475 + $0x18] sm:$0xf]
    %v1483 = vld [vmem:[%s1475 + $0x1c] sm:$0xf]
    %v1484 = vld [vmem:[%s1475 + $0x20] sm:$0xf]
    %v1485 = vld [vmem:[%s1475 + $0x24] sm:$0xf]
    %v1486 = vld [vmem:[%s1475 + $0x28] sm:$0xf]
    %v1487 = vld [vmem:[%s1475 + $0x2c] sm:$0xf]
    %v1488 = vld [vmem:[%s1475 + $0x30] sm:$0xf]
    %v1489 = vld [vmem:[%s1475 + $0x34] sm:$0xf]
    %v1490 = vld [vmem:[%s1475 + $0x38] sm:$0xf]
    %v1491 = vld [vmem:[%s1475 + $0x3c] sm:$0xf]
    %v1492 = vlaneseq
    %v1493 = vshrl.u32 %v1492, 7
    %v1494 = vsub.s32 3, %v1493
    %v1495 = vrot.slane %v1322, %v1494
    %v1512 = vunpack.c.l.b16 %v1476
    %v1513 = vunpack.c.l.b16 %v1477
    %v1514 = vunpack.c.l.b16 %v1478
    %v1515 = vunpack.c.l.b16 %v1479
    %v1516 = vunpack.c.l.b16 %v1480
    %v1517 = vunpack.c.l.b16 %v1481
    %v1518 = vunpack.c.l.b16 %v1482
    %v1519 = vunpack.c.l.b16 %v1483
    %v1520 = vunpack.c.l.b16 %v1484
    %v1521 = vunpack.c.l.b16 %v1485
    %v1522 = vunpack.c.l.b16 %v1486
    %v1523 = vunpack.c.l.b16 %v1487
    %v1524 = vunpack.c.l.b16 %v1488
    %v1525 = vunpack.c.l.b16 %v1489
    %v1526 = vunpack.c.l.b16 %v1490
    %v1527 = vunpack.c.l.b16 %v1491
    %v1528 = vpack.c.b16 %v1513, %v1512
    %v1529 = vpack.c.b16 %v1515, %v1514
    %v1530 = vpack.c.b16 %v1517, %v1516
    %v1531 = vpack.c.b16 %v1519, %v1518
    %v1532 = vpack.c.b16 %v1521, %v1520
    %v1533 = vpack.c.b16 %v1523, %v1522
    %v1534 = vpack.c.b16 %v1525, %v1524
    %v1535 = vpack.c.b16 %v1527, %v1526
    %1544 = vmatprep.subr.bf16.mxu0 0
    %1545 = vmatpush1.bf16.msra.mxu0 %v1535
    %1546 = vmatprep.subr.bf16.mxu0 0
    %1547 = vmatpush1.bf16.msra.mxu0 %v1534
    %1548 = vmatprep.subr.bf16.mxu0 0
    %1549 = vmatpush1.bf16.msra.mxu0 %v1533
    %1550 = vmatprep.subr.bf16.mxu0 0
    %1551 = vmatpush1.bf16.msra.mxu0 %v1532
    %1552 = vmatprep.subr.bf16.mxu0 0
    %1553 = vmatpush1.bf16.msra.mxu0 %v1531
    %1554 = vmatprep.subr.bf16.mxu0 0
    %1555 = vmatpush1.bf16.msra.mxu0 %v1530
    %1556 = vmatprep.subr.bf16.mxu0 0
    %1557 = vmatpush1.bf16.msra.mxu0 %v1529
    %1558 = vmatprep.subr.bf16.mxu0 0
    %1559 = vmatpush1.bf16.msra.mxu0 %v1528
    %1560 = vmatprep.subr.bf16.mxu0 0
    %1561 = vmatpush2.bf16.msra.mxu0 0
    %1562 = vmatprep.subr.bf16.mxu0 0
    %1563 = vmatpush2.bf16.msra.mxu0 0
    %1564 = vmatprep.subr.bf16.mxu0 0
    %1565 = vmatpush2.bf16.msra.mxu0 0
    %1566 = vmatprep.subr.bf16.mxu0 0
    %1567 = vmatpush2.bf16.msra.mxu0 0
    %1568 = vmatprep.subr.bf16.mxu0 0
    %1569 = vmatpush2.bf16.msra.mxu0 0
    %1570 = vmatprep.subr.bf16.mxu0 0
    %1571 = vmatpush2.bf16.msra.mxu0 0
    %1572 = vmatprep.subr.bf16.mxu0 0
    %1573 = vmatpush2.bf16.msra.mxu0 0
    %1574 = vmatprep.subr.bf16.mxu0 0
    %1575 = vmatpush2.bf16.msra.mxu0 0
    %1576 = vmatprep.mubr.bf16.mxu0 0
    %1577 = vmatmul.mubr.bf16.gmra.mxu0 %v1474
    %v1578 = vpop.f32.mrf.mxu0
    %v1579 = vadd.f32 %v1495, %v1578
    %v1580 = vpop.f32.mrf.mxu0
    %v1581 = vpop.f32.mrf.mxu0
    %v1582 = vadd.f32 %v1495, %v1581
    %v1583 = vpop.f32.mrf.mxu0
    %1584 = vdwg.mxu0
    %1585 = vadd.xlane.f32.xlu0 %v1579
    %v1586 = vpop.xlane.xlu0 %1585
    %1587 = vadd.xlane.f32.xlu0 %v1582
    %v1588 = vpop.xlane.xlu0 %1587
    %v1589 = vmul.f32 %v1579, %v1579
    %v1590 = vmul.f32 %v1582, %v1582
    %1591 = vadd.xlane.f32.xlu0 %v1589
    %v1592 = vpop.xlane.xlu0 %1591
    %1593 = vadd.xlane.f32.xlu0 %v1590
    %v1594 = vpop.xlane.xlu0 %1593
    %v1595 = vmul.f32 %v1586, 0.03125
    %v1596 = vmul.f32 %v1588, 0.03125
    %v1597 = vmul.f32 %v1592, 0.03125
    %v1598 = vmul.f32 %v1594, 0.03125
    %v1599 = vmul.f32 %v1595, %v1595
    %v1600 = vmul.f32 %v1596, %v1596
    %v1601 = vsub.f32 %v1597, %v1599
    %v1602 = vsub.f32 %v1598, %v1600
    %v1603 = vadd.f32 %v1601, 1e-05
    %v1604 = vadd.f32 %v1602, 1e-05
    %v1605 = vrsqrt.pop %v1603
    %v1606 = vrsqrt.pop %v1604
    %v1607 = vsub.f32 %v1579, %v1595
    %v1608 = vsub.f32 %v1582, %v1596
    %v1609 = vmul.f32 %v1607, %v1605
    %v1610 = vmul.f32 %v1608, %v1606
    %v1611 = vlaneseq
    %v1612 = vshrl.u32 %v1611, 7
    %v1613 = vsub.s32 4, %v1612
    %v1614 = vrot.slane %v1322, %v1613
    %v1615 = vmul.f32 %v1609, %v1614
    %v1616 = vmul.f32 %v1610, %v1614
    %v1617 = vlaneseq
    %v1618 = vshrl.u32 %v1617, 7
    %v1619 = vsub.s32 5, %v1618
    %v1620 = vrot.slane %v1322, %v1619
    %v1621 = vadd.f32 %v1615, %v1620
    %v1622 = vadd.f32 %v1616, %v1620
    %v1623 = vadd.f32 %v1621, %v1319
    %v1624 = vadd.f32 %v1622, %v1320
    %v1625 = vmax.f32 %v1623, 0.0
    %v1626 = vmax.f32 %v1624, 0.0
    %s1627 = scalar_lea.vmem [#allocation11], 24
    %v1628 = vld [vmem:[%s1627] sm:$0x3f]
    %v1629 = vpack.c.bf16 %v1626, %v1625
    %s1630 = scalar_lea.vmem [#allocation8], 192
    %v1631 = vld [vmem:[%s1630] sm:$0xf]
    %v1632 = vld [vmem:[%s1630 + $0x4] sm:$0xf]
    %v1633 = vld [vmem:[%s1630 + $0x8] sm:$0xf]
    %v1634 = vld [vmem:[%s1630 + $0xc] sm:$0xf]
    %v1635 = vld [vmem:[%s1630 + $0x10] sm:$0xf]
    %v1636 = vld [vmem:[%s1630 + $0x14] sm:$0xf]
    %v1637 = vld [vmem:[%s1630 + $0x18] sm:$0xf]
    %v1638 = vld [vmem:[%s1630 + $0x1c] sm:$0xf]
    %v1639 = vld [vmem:[%s1630 + $0x20] sm:$0xf]
    %v1640 = vld [vmem:[%s1630 + $0x24] sm:$0xf]
    %v1641 = vld [vmem:[%s1630 + $0x28] sm:$0xf]
    %v1642 = vld [vmem:[%s1630 + $0x2c] sm:$0xf]
    %v1643 = vld [vmem:[%s1630 + $0x30] sm:$0xf]
    %v1644 = vld [vmem:[%s1630 + $0x34] sm:$0xf]
    %v1645 = vld [vmem:[%s1630 + $0x38] sm:$0xf]
    %v1646 = vld [vmem:[%s1630 + $0x3c] sm:$0xf]
    %v1647 = vlaneseq
    %v1648 = vshrl.u32 %v1647, 7
    %v1649 = vsub.s32 0, %v1648
    %v1650 = vrot.slane %v1628, %v1649
    %v1667 = vunpack.c.l.b16 %v1631
    %v1668 = vunpack.c.l.b16 %v1632
    %v1669 = vunpack.c.l.b16 %v1633
    %v1670 = vunpack.c.l.b16 %v1634
    %v1671 = vunpack.c.l.b16 %v1635
    %v1672 = vunpack.c.l.b16 %v1636
    %v1673 = vunpack.c.l.b16 %v1637
    %v1674 = vunpack.c.l.b16 %v1638
    %v1675 = vunpack.c.l.b16 %v1639
    %v1676 = vunpack.c.l.b16 %v1640
    %v1677 = vunpack.c.l.b16 %v1641
    %v1678 = vunpack.c.l.b16 %v1642
    %v1679 = vunpack.c.l.b16 %v1643
    %v1680 = vunpack.c.l.b16 %v1644
    %v1681 = vunpack.c.l.b16 %v1645
    %v1682 = vunpack.c.l.b16 %v1646
    %v1683 = vpack.c.b16 %v1668, %v1667
    %v1684 = vpack.c.b16 %v1670, %v1669
    %v1685 = vpack.c.b16 %v1672, %v1671
    %v1686 = vpack.c.b16 %v1674, %v1673
    %v1687 = vpack.c.b16 %v1676, %v1675
    %v1688 = vpack.c.b16 %v1678, %v1677
    %v1689 = vpack.c.b16 %v1680, %v1679
    %v1690 = vpack.c.b16 %v1682, %v1681
    %1699 = vmatprep.subr.bf16.mxu0 0
    %1700 = vmatpush1.bf16.msra.mxu0 %v1690
    %1701 = vmatprep.subr.bf16.mxu0 0
    %1702 = vmatpush1.bf16.msra.mxu0 %v1689
    %1703 = vmatprep.subr.bf16.mxu0 0
    %1704 = vmatpush1.bf16.msra.mxu0 %v1688
    %1705 = vmatprep.subr.bf16.mxu0 0
    %1706 = vmatpush1.bf16.msra.mxu0 %v1687
    %1707 = vmatprep.subr.bf16.mxu0 0
    %1708 = vmatpush1.bf16.msra.mxu0 %v1686
    %1709 = vmatprep.subr.bf16.mxu0 0
    %1710 = vmatpush1.bf16.msra.mxu0 %v1685
    %1711 = vmatprep.subr.bf16.mxu0 0
    %1712 = vmatpush1.bf16.msra.mxu0 %v1684
    %1713 = vmatprep.subr.bf16.mxu0 0
    %1714 = vmatpush1.bf16.msra.mxu0 %v1683
    %1715 = vmatprep.subr.bf16.mxu0 0
    %1716 = vmatpush2.bf16.msra.mxu0 0
    %1717 = vmatprep.subr.bf16.mxu0 0
    %1718 = vmatpush2.bf16.msra.mxu0 0
    %1719 = vmatprep.subr.bf16.mxu0 0
    %1720 = vmatpush2.bf16.msra.mxu0 0
    %1721 = vmatprep.subr.bf16.mxu0 0
    %1722 = vmatpush2.bf16.msra.mxu0 0
    %1723 = vmatprep.subr.bf16.mxu0 0
    %1724 = vmatpush2.bf16.msra.mxu0 0
    %1725 = vmatprep.subr.bf16.mxu0 0
    %1726 = vmatpush2.bf16.msra.mxu0 0
    %1727 = vmatprep.subr.bf16.mxu0 0
    %1728 = vmatpush2.bf16.msra.mxu0 0
    %1729 = vmatprep.subr.bf16.mxu0 0
    %1730 = vmatpush2.bf16.msra.mxu0 0
    %1731 = vmatprep.mubr.bf16.mxu0 0
    %1732 = vmatmul.mubr.bf16.gmra.mxu0 %v1629
    %v1733 = vpop.f32.mrf.mxu0
    %v1734 = vadd.f32 %v1650, %v1733
    %v1735 = vpop.f32.mrf.mxu0
    %v1736 = vpop.f32.mrf.mxu0
    %v1737 = vadd.f32 %v1650, %v1736
    %v1738 = vpop.f32.mrf.mxu0
    %1739 = vdwg.mxu0
    %1740 = vadd.xlane.f32.xlu0 %v1734
    %v1741 = vpop.xlane.xlu0 %1740
    %1742 = vadd.xlane.f32.xlu0 %v1737
    %v1743 = vpop.xlane.xlu0 %1742
    %v1744 = vmul.f32 %v1734, %v1734
    %v1745 = vmul.f32 %v1737, %v1737
    %1746 = vadd.xlane.f32.xlu0 %v1744
    %v1747 = vpop.xlane.xlu0 %1746
    %1748 = vadd.xlane.f32.xlu0 %v1745
    %v1749 = vpop.xlane.xlu0 %1748
    %v1750 = vmul.f32 %v1741, 0.03125
    %v1751 = vmul.f32 %v1743, 0.03125
    %v1752 = vmul.f32 %v1747, 0.03125
    %v1753 = vmul.f32 %v1749, 0.03125
    %v1754 = vmul.f32 %v1750, %v1750
    %v1755 = vmul.f32 %v1751, %v1751
    %v1756 = vsub.f32 %v1752, %v1754
    %v1757 = vsub.f32 %v1753, %v1755
    %v1758 = vadd.f32 %v1756, 1e-05
    %v1759 = vadd.f32 %v1757, 1e-05
    %v1760 = vrsqrt.pop %v1758
    %v1761 = vrsqrt.pop %v1759
    %v1762 = vsub.f32 %v1734, %v1750
    %v1763 = vsub.f32 %v1737, %v1751
    %v1764 = vmul.f32 %v1762, %v1760
    %v1765 = vmul.f32 %v1763, %v1761
    %v1766 = vlaneseq
    %v1767 = vshrl.u32 %v1766, 7
    %v1768 = vsub.s32 1, %v1767
    %v1769 = vrot.slane %v1628, %v1768
    %v1770 = vmul.f32 %v1764, %v1769
    %v1771 = vmul.f32 %v1765, %v1769
    %v1772 = vlaneseq
    %v1773 = vshrl.u32 %v1772, 7
    %v1774 = vsub.s32 2, %v1773
    %v1775 = vrot.slane %v1628, %v1774
    %v1776 = vadd.f32 %v1770, %v1775
    %v1777 = vadd.f32 %v1771, %v1775
    %v1778 = vmax.f32 %v1776, 0.0
    %v1779 = vmax.f32 %v1777, 0.0
    %v1780 = vpack.c.bf16 %v1779, %v1778
    %s1781 = scalar_lea.vmem [#allocation10], 192
    %v1782 = vld [vmem:[%s1781] sm:$0xf]
    %v1783 = vld [vmem:[%s1781 + $0x4] sm:$0xf]
    %v1784 = vld [vmem:[%s1781 + $0x8] sm:$0xf]
    %v1785 = vld [vmem:[%s1781 + $0xc] sm:$0xf]
    %v1786 = vld [vmem:[%s1781 + $0x10] sm:$0xf]
    %v1787 = vld [vmem:[%s1781 + $0x14] sm:$0xf]
    %v1788 = vld [vmem:[%s1781 + $0x18] sm:$0xf]
    %v1789 = vld [vmem:[%s1781 + $0x1c] sm:$0xf]
    %v1790 = vld [vmem:[%s1781 + $0x20] sm:$0xf]
    %v1791 = vld [vmem:[%s1781 + $0x24] sm:$0xf]
    %v1792 = vld [vmem:[%s1781 + $0x28] sm:$0xf]
    %v1793 = vld [vmem:[%s1781 + $0x2c] sm:$0xf]
    %v1794 = vld [vmem:[%s1781 + $0x30] sm:$0xf]
    %v1795 = vld [vmem:[%s1781 + $0x34] sm:$0xf]
    %v1796 = vld [vmem:[%s1781 + $0x38] sm:$0xf]
    %v1797 = vld [vmem:[%s1781 + $0x3c] sm:$0xf]
    %v1798 = vlaneseq
    %v1799 = vshrl.u32 %v1798, 7
    %v1800 = vsub.s32 3, %v1799
    %v1801 = vrot.slane %v1628, %v1800
    %v1818 = vunpack.c.l.b16 %v1782
    %v1819 = vunpack.c.l.b16 %v1783
    %v1820 = vunpack.c.l.b16 %v1784
    %v1821 = vunpack.c.l.b16 %v1785
    %v1822 = vunpack.c.l.b16 %v1786
    %v1823 = vunpack.c.l.b16 %v1787
    %v1824 = vunpack.c.l.b16 %v1788
    %v1825 = vunpack.c.l.b16 %v1789
    %v1826 = vunpack.c.l.b16 %v1790
    %v1827 = vunpack.c.l.b16 %v1791
    %v1828 = vunpack.c.l.b16 %v1792
    %v1829 = vunpack.c.l.b16 %v1793
    %v1830 = vunpack.c.l.b16 %v1794
    %v1831 = vunpack.c.l.b16 %v1795
    %v1832 = vunpack.c.l.b16 %v1796
    %v1833 = vunpack.c.l.b16 %v1797
    %v1834 = vpack.c.b16 %v1819, %v1818
    %v1835 = vpack.c.b16 %v1821, %v1820
    %v1836 = vpack.c.b16 %v1823, %v1822
    %v1837 = vpack.c.b16 %v1825, %v1824
    %v1838 = vpack.c.b16 %v1827, %v1826
    %v1839 = vpack.c.b16 %v1829, %v1828
    %v1840 = vpack.c.b16 %v1831, %v1830
    %v1841 = vpack.c.b16 %v1833, %v1832
    %1850 = vmatprep.subr.bf16.mxu0 0
    %1851 = vmatpush1.bf16.msra.mxu0 %v1841
    %1852 = vmatprep.subr.bf16.mxu0 0
    %1853 = vmatpush1.bf16.msra.mxu0 %v1840
    %1854 = vmatprep.subr.bf16.mxu0 0
    %1855 = vmatpush1.bf16.msra.mxu0 %v1839
    %1856 = vmatprep.subr.bf16.mxu0 0
    %1857 = vmatpush1.bf16.msra.mxu0 %v1838
    %1858 = vmatprep.subr.bf16.mxu0 0
    %1859 = vmatpush1.bf16.msra.mxu0 %v1837
    %1860 = vmatprep.subr.bf16.mxu0 0
    %1861 = vmatpush1.bf16.msra.mxu0 %v1836
    %1862 = vmatprep.subr.bf16.mxu0 0
    %1863 = vmatpush1.bf16.msra.mxu0 %v1835
    %1864 = vmatprep.subr.bf16.mxu0 0
    %1865 = vmatpush1.bf16.msra.mxu0 %v1834
    %1866 = vmatprep.subr.bf16.mxu0 0
    %1867 = vmatpush2.bf16.msra.mxu0 0
    %1868 = vmatprep.subr.bf16.mxu0 0
    %1869 = vmatpush2.bf16.msra.mxu0 0
    %1870 = vmatprep.subr.bf16.mxu0 0
    %1871 = vmatpush2.bf16.msra.mxu0 0
    %1872 = vmatprep.subr.bf16.mxu0 0
    %1873 = vmatpush2.bf16.msra.mxu0 0
    %1874 = vmatprep.subr.bf16.mxu0 0
    %1875 = vmatpush2.bf16.msra.mxu0 0
    %1876 = vmatprep.subr.bf16.mxu0 0
    %1877 = vmatpush2.bf16.msra.mxu0 0
    %1878 = vmatprep.subr.bf16.mxu0 0
    %1879 = vmatpush2.bf16.msra.mxu0 0
    %1880 = vmatprep.subr.bf16.mxu0 0
    %1881 = vmatpush2.bf16.msra.mxu0 0
    %1882 = vmatprep.mubr.bf16.mxu0 0
    %1883 = vmatmul.mubr.bf16.gmra.mxu0 %v1780
    %v1884 = vpop.f32.mrf.mxu0
    %v1885 = vadd.f32 %v1801, %v1884
    %v1886 = vpop.f32.mrf.mxu0
    %v1887 = vpop.f32.mrf.mxu0
    %v1888 = vadd.f32 %v1801, %v1887
    %v1889 = vpop.f32.mrf.mxu0
    %1890 = vdwg.mxu0
    %1891 = vadd.xlane.f32.xlu0 %v1885
    %v1892 = vpop.xlane.xlu0 %1891
    %1893 = vadd.xlane.f32.xlu0 %v1888
    %v1894 = vpop.xlane.xlu0 %1893
    %v1895 = vmul.f32 %v1885, %v1885
    %v1896 = vmul.f32 %v1888, %v1888
    %1897 = vadd.xlane.f32.xlu0 %v1895
    %v1898 = vpop.xlane.xlu0 %1897
    %1899 = vadd.xlane.f32.xlu0 %v1896
    %v1900 = vpop.xlane.xlu0 %1899
    %v1901 = vmul.f32 %v1892, 0.03125
    %v1902 = vmul.f32 %v1894, 0.03125
    %v1903 = vmul.f32 %v1898, 0.03125
    %v1904 = vmul.f32 %v1900, 0.03125
    %v1905 = vmul.f32 %v1901, %v1901
    %v1906 = vmul.f32 %v1902, %v1902
    %v1907 = vsub.f32 %v1903, %v1905
    %v1908 = vsub.f32 %v1904, %v1906
    %v1909 = vadd.f32 %v1907, 1e-05
    %v1910 = vadd.f32 %v1908, 1e-05
    %v1911 = vrsqrt.pop %v1909
    %v1912 = vrsqrt.pop %v1910
    %v1913 = vsub.f32 %v1885, %v1901
    %v1914 = vsub.f32 %v1888, %v1902
    %v1915 = vmul.f32 %v1913, %v1911
    %v1916 = vmul.f32 %v1914, %v1912
    %v1917 = vlaneseq
    %v1918 = vshrl.u32 %v1917, 7
    %v1919 = vsub.s32 4, %v1918
    %v1920 = vrot.slane %v1628, %v1919
    %v1921 = vmul.f32 %v1915, %v1920
    %v1922 = vmul.f32 %v1916, %v1920
    %v1923 = vlaneseq
    %v1924 = vshrl.u32 %v1923, 7
    %v1925 = vsub.s32 5, %v1924
    %v1926 = vrot.slane %v1628, %v1925
    %v1927 = vadd.f32 %v1921, %v1926
    %v1928 = vadd.f32 %v1922, %v1926
    %v1929 = vadd.f32 %v1927, %v1625
    %v1930 = vadd.f32 %v1928, %v1626
    %v1931 = vmax.f32 %v1929, 0.0
    %v1932 = vmax.f32 %v1930, 0.0
    %s1933 = scalar_lea.vmem [#allocation11], 32
    %v1934 = vld [vmem:[%s1933] sm:$0x3f]
    %v1935 = vpack.c.bf16 %v1932, %v1931
    %s1936 = scalar_lea.vmem [#allocation8], 256
    %v1937 = vld [vmem:[%s1936] sm:$0xf]
    %v1938 = vld [vmem:[%s1936 + $0x4] sm:$0xf]
    %v1939 = vld [vmem:[%s1936 + $0x8] sm:$0xf]
    %v1940 = vld [vmem:[%s1936 + $0xc] sm:$0xf]
    %v1941 = vld [vmem:[%s1936 + $0x10] sm:$0xf]
    %v1942 = vld [vmem:[%s1936 + $0x14] sm:$0xf]
    %v1943 = vld [vmem:[%s1936 + $0x18] sm:$0xf]
    %v1944 = vld [vmem:[%s1936 + $0x1c] sm:$0xf]
    %v1945 = vld [vmem:[%s1936 + $0x20] sm:$0xf]
    %v1946 = vld [vmem:[%s1936 + $0x24] sm:$0xf]
    %v1947 = vld [vmem:[%s1936 + $0x28] sm:$0xf]
    %v1948 = vld [vmem:[%s1936 + $0x2c] sm:$0xf]
    %v1949 = vld [vmem:[%s1936 + $0x30] sm:$0xf]
    %v1950 = vld [vmem:[%s1936 + $0x34] sm:$0xf]
    %v1951 = vld [vmem:[%s1936 + $0x38] sm:$0xf]
    %v1952 = vld [vmem:[%s1936 + $0x3c] sm:$0xf]
    %v1953 = vlaneseq
    %v1954 = vshrl.u32 %v1953, 7
    %v1955 = vsub.s32 0, %v1954
    %v1956 = vrot.slane %v1934, %v1955
    %v1973 = vunpack.c.l.b16 %v1937
    %v1974 = vunpack.c.l.b16 %v1938
    %v1975 = vunpack.c.l.b16 %v1939
    %v1976 = vunpack.c.l.b16 %v1940
    %v1977 = vunpack.c.l.b16 %v1941
    %v1978 = vunpack.c.l.b16 %v1942
    %v1979 = vunpack.c.l.b16 %v1943
    %v1980 = vunpack.c.l.b16 %v1944
    %v1981 = vunpack.c.l.b16 %v1945
    %v1982 = vunpack.c.l.b16 %v1946
    %v1983 = vunpack.c.l.b16 %v1947
    %v1984 = vunpack.c.l.b16 %v1948
    %v1985 = vunpack.c.l.b16 %v1949
    %v1986 = vunpack.c.l.b16 %v1950
    %v1987 = vunpack.c.l.b16 %v1951
    %v1988 = vunpack.c.l.b16 %v1952
    %v1989 = vpack.c.b16 %v1974, %v1973
    %v1990 = vpack.c.b16 %v1976, %v1975
    %v1991 = vpack.c.b16 %v1978, %v1977
    %v1992 = vpack.c.b16 %v1980, %v1979
    %v1993 = vpack.c.b16 %v1982, %v1981
    %v1994 = vpack.c.b16 %v1984, %v1983
    %v1995 = vpack.c.b16 %v1986, %v1985
    %v1996 = vpack.c.b16 %v1988, %v1987
    %2005 = vmatprep.subr.bf16.mxu0 0
    %2006 = vmatpush1.bf16.msra.mxu0 %v1996
    %2007 = vmatprep.subr.bf16.mxu0 0
    %2008 = vmatpush1.bf16.msra.mxu0 %v1995
    %2009 = vmatprep.subr.bf16.mxu0 0
    %2010 = vmatpush1.bf16.msra.mxu0 %v1994
    %2011 = vmatprep.subr.bf16.mxu0 0
    %2012 = vmatpush1.bf16.msra.mxu0 %v1993
    %2013 = vmatprep.subr.bf16.mxu0 0
    %2014 = vmatpush1.bf16.msra.mxu0 %v1992
    %2015 = vmatprep.subr.bf16.mxu0 0
    %2016 = vmatpush1.bf16.msra.mxu0 %v1991
    %2017 = vmatprep.subr.bf16.mxu0 0
    %2018 = vmatpush1.bf16.msra.mxu0 %v1990
    %2019 = vmatprep.subr.bf16.mxu0 0
    %2020 = vmatpush1.bf16.msra.mxu0 %v1989
    %2021 = vmatprep.subr.bf16.mxu0 0
    %2022 = vmatpush2.bf16.msra.mxu0 0
    %2023 = vmatprep.subr.bf16.mxu0 0
    %2024 = vmatpush2.bf16.msra.mxu0 0
    %2025 = vmatprep.subr.bf16.mxu0 0
    %2026 = vmatpush2.bf16.msra.mxu0 0
    %2027 = vmatprep.subr.bf16.mxu0 0
    %2028 = vmatpush2.bf16.msra.mxu0 0
    %2029 = vmatprep.subr.bf16.mxu0 0
    %2030 = vmatpush2.bf16.msra.mxu0 0
    %2031 = vmatprep.subr.bf16.mxu0 0
    %2032 = vmatpush2.bf16.msra.mxu0 0
    %2033 = vmatprep.subr.bf16.mxu0 0
    %2034 = vmatpush2.bf16.msra.mxu0 0
    %2035 = vmatprep.subr.bf16.mxu0 0
    %2036 = vmatpush2.bf16.msra.mxu0 0
    %2037 = vmatprep.mubr.bf16.mxu0 0
    %2038 = vmatmul.mubr.bf16.gmra.mxu0 %v1935
    %v2039 = vpop.f32.mrf.mxu0
    %v2040 = vadd.f32 %v1956, %v2039
    %v2041 = vpop.f32.mrf.mxu0
    %v2042 = vpop.f32.mrf.mxu0
    %v2043 = vadd.f32 %v1956, %v2042
    %v2044 = vpop.f32.mrf.mxu0
    %2045 = vdwg.mxu0
    %2046 = vadd.xlane.f32.xlu0 %v2040
    %v2047 = vpop.xlane.xlu0 %2046
    %2048 = vadd.xlane.f32.xlu0 %v2043
    %v2049 = vpop.xlane.xlu0 %2048
    %v2050 = vmul.f32 %v2040, %v2040
    %v2051 = vmul.f32 %v2043, %v2043
    %2052 = vadd.xlane.f32.xlu0 %v2050
    %v2053 = vpop.xlane.xlu0 %2052
    %2054 = vadd.xlane.f32.xlu0 %v2051
    %v2055 = vpop.xlane.xlu0 %2054
    %v2056 = vmul.f32 %v2047, 0.03125
    %v2057 = vmul.f32 %v2049, 0.03125
    %v2058 = vmul.f32 %v2053, 0.03125
    %v2059 = vmul.f32 %v2055, 0.03125
    %v2060 = vmul.f32 %v2056, %v2056
    %v2061 = vmul.f32 %v2057, %v2057
    %v2062 = vsub.f32 %v2058, %v2060
    %v2063 = vsub.f32 %v2059, %v2061
    %v2064 = vadd.f32 %v2062, 1e-05
    %v2065 = vadd.f32 %v2063, 1e-05
    %v2066 = vrsqrt.pop %v2064
    %v2067 = vrsqrt.pop %v2065
    %v2068 = vsub.f32 %v2040, %v2056
    %v2069 = vsub.f32 %v2043, %v2057
    %v2070 = vmul.f32 %v2068, %v2066
    %v2071 = vmul.f32 %v2069, %v2067
    %v2072 = vlaneseq
    %v2073 = vshrl.u32 %v2072, 7
    %v2074 = vsub.s32 1, %v2073
    %v2075 = vrot.slane %v1934, %v2074
    %v2076 = vmul.f32 %v2070, %v2075
    %v2077 = vmul.f32 %v2071, %v2075
    %v2078 = vlaneseq
    %v2079 = vshrl.u32 %v2078, 7
    %v2080 = vsub.s32 2, %v2079
    %v2081 = vrot.slane %v1934, %v2080
    %v2082 = vadd.f32 %v2076, %v2081
    %v2083 = vadd.f32 %v2077, %v2081
    %v2084 = vmax.f32 %v2082, 0.0
    %v2085 = vmax.f32 %v2083, 0.0
    %v2086 = vpack.c.bf16 %v2085, %v2084
    %s2087 = scalar_lea.vmem [#allocation10], 256
    %v2088 = vld [vmem:[%s2087] sm:$0xf]
    %v2089 = vld [vmem:[%s2087 + $0x4] sm:$0xf]
    %v2090 = vld [vmem:[%s2087 + $0x8] sm:$0xf]
    %v2091 = vld [vmem:[%s2087 + $0xc] sm:$0xf]
    %v2092 = vld [vmem:[%s2087 + $0x10] sm:$0xf]
    %v2093 = vld [vmem:[%s2087 + $0x14] sm:$0xf]
    %v2094 = vld [vmem:[%s2087 + $0x18] sm:$0xf]
    %v2095 = vld [vmem:[%s2087 + $0x1c] sm:$0xf]
    %v2096 = vld [vmem:[%s2087 + $0x20] sm:$0xf]
    %v2097 = vld [vmem:[%s2087 + $0x24] sm:$0xf]
    %v2098 = vld [vmem:[%s2087 + $0x28] sm:$0xf]
    %v2099 = vld [vmem:[%s2087 + $0x2c] sm:$0xf]
    %v2100 = vld [vmem:[%s2087 + $0x30] sm:$0xf]
    %v2101 = vld [vmem:[%s2087 + $0x34] sm:$0xf]
    %v2102 = vld [vmem:[%s2087 + $0x38] sm:$0xf]
    %v2103 = vld [vmem:[%s2087 + $0x3c] sm:$0xf]
    %v2104 = vlaneseq
    %v2105 = vshrl.u32 %v2104, 7
    %v2106 = vsub.s32 3, %v2105
    %v2107 = vrot.slane %v1934, %v2106
    %v2124 = vunpack.c.l.b16 %v2088
    %v2125 = vunpack.c.l.b16 %v2089
    %v2126 = vunpack.c.l.b16 %v2090
    %v2127 = vunpack.c.l.b16 %v2091
    %v2128 = vunpack.c.l.b16 %v2092
    %v2129 = vunpack.c.l.b16 %v2093
    %v2130 = vunpack.c.l.b16 %v2094
    %v2131 = vunpack.c.l.b16 %v2095
    %v2132 = vunpack.c.l.b16 %v2096
    %v2133 = vunpack.c.l.b16 %v2097
    %v2134 = vunpack.c.l.b16 %v2098
    %v2135 = vunpack.c.l.b16 %v2099
    %v2136 = vunpack.c.l.b16 %v2100
    %v2137 = vunpack.c.l.b16 %v2101
    %v2138 = vunpack.c.l.b16 %v2102
    %v2139 = vunpack.c.l.b16 %v2103
    %v2140 = vpack.c.b16 %v2125, %v2124
    %v2141 = vpack.c.b16 %v2127, %v2126
    %v2142 = vpack.c.b16 %v2129, %v2128
    %v2143 = vpack.c.b16 %v2131, %v2130
    %v2144 = vpack.c.b16 %v2133, %v2132
    %v2145 = vpack.c.b16 %v2135, %v2134
    %v2146 = vpack.c.b16 %v2137, %v2136
    %v2147 = vpack.c.b16 %v2139, %v2138
    %2156 = vmatprep.subr.bf16.mxu0 0
    %2157 = vmatpush1.bf16.msra.mxu0 %v2147
    %2158 = vmatprep.subr.bf16.mxu0 0
    %2159 = vmatpush1.bf16.msra.mxu0 %v2146
    %2160 = vmatprep.subr.bf16.mxu0 0
    %2161 = vmatpush1.bf16.msra.mxu0 %v2145
    %2162 = vmatprep.subr.bf16.mxu0 0
    %2163 = vmatpush1.bf16.msra.mxu0 %v2144
    %2164 = vmatprep.subr.bf16.mxu0 0
    %2165 = vmatpush1.bf16.msra.mxu0 %v2143
    %2166 = vmatprep.subr.bf16.mxu0 0
    %2167 = vmatpush1.bf16.msra.mxu0 %v2142
    %2168 = vmatprep.subr.bf16.mxu0 0
    %2169 = vmatpush1.bf16.msra.mxu0 %v2141
    %2170 = vmatprep.subr.bf16.mxu0 0
    %2171 = vmatpush1.bf16.msra.mxu0 %v2140
    %2172 = vmatprep.subr.bf16.mxu0 0
    %2173 = vmatpush2.bf16.msra.mxu0 0
    %2174 = vmatprep.subr.bf16.mxu0 0
    %2175 = vmatpush2.bf16.msra.mxu0 0
    %2176 = vmatprep.subr.bf16.mxu0 0
    %2177 = vmatpush2.bf16.msra.mxu0 0
    %2178 = vmatprep.subr.bf16.mxu0 0
    %2179 = vmatpush2.bf16.msra.mxu0 0
    %2180 = vmatprep.subr.bf16.mxu0 0
    %2181 = vmatpush2.bf16.msra.mxu0 0
    %2182 = vmatprep.subr.bf16.mxu0 0
    %2183 = vmatpush2.bf16.msra.mxu0 0
    %2184 = vmatprep.subr.bf16.mxu0 0
    %2185 = vmatpush2.bf16.msra.mxu0 0
    %2186 = vmatprep.subr.bf16.mxu0 0
    %2187 = vmatpush2.bf16.msra.mxu0 0
    %2188 = vmatprep.mubr.bf16.mxu0 0
    %2189 = vmatmul.mubr.bf16.gmra.mxu0 %v2086
    %v2190 = vpop.f32.mrf.mxu0
    %v2191 = vadd.f32 %v2107, %v2190
    %v2192 = vpop.f32.mrf.mxu0
    %v2193 = vpop.f32.mrf.mxu0
    %v2194 = vadd.f32 %v2107, %v2193
    %v2195 = vpop.f32.mrf.mxu0
    %2196 = vdwg.mxu0
    %2197 = vadd.xlane.f32.xlu0 %v2191
    %v2198 = vpop.xlane.xlu0 %2197
    %2199 = vadd.xlane.f32.xlu0 %v2194
    %v2200 = vpop.xlane.xlu0 %2199
    %v2201 = vmul.f32 %v2191, %v2191
    %v2202 = vmul.f32 %v2194, %v2194
    %2203 = vadd.xlane.f32.xlu0 %v2201
    %v2204 = vpop.xlane.xlu0 %2203
    %2205 = vadd.xlane.f32.xlu0 %v2202
    %v2206 = vpop.xlane.xlu0 %2205
    %v2207 = vmul.f32 %v2198, 0.03125
    %v2208 = vmul.f32 %v2200, 0.03125
    %v2209 = vmul.f32 %v2204, 0.03125
    %v2210 = vmul.f32 %v2206, 0.03125
    %v2211 = vmul.f32 %v2207, %v2207
    %v2212 = vmul.f32 %v2208, %v2208
    %v2213 = vsub.f32 %v2209, %v2211
    %v2214 = vsub.f32 %v2210, %v2212
    %v2215 = vadd.f32 %v2213, 1e-05
    %v2216 = vadd.f32 %v2214, 1e-05
    %v2217 = vrsqrt.pop %v2215
    %v2218 = vrsqrt.pop %v2216
    %v2219 = vsub.f32 %v2191, %v2207
    %v2220 = vsub.f32 %v2194, %v2208
    %v2221 = vmul.f32 %v2219, %v2217
    %v2222 = vmul.f32 %v2220, %v2218
    %v2223 = vlaneseq
    %v2224 = vshrl.u32 %v2223, 7
    %v2225 = vsub.s32 4, %v2224
    %v2226 = vrot.slane %v1934, %v2225
    %v2227 = vmul.f32 %v2221, %v2226
    %v2228 = vmul.f32 %v2222, %v2226
    %v2229 = vlaneseq
    %v2230 = vshrl.u32 %v2229, 7
    %v2231 = vsub.s32 5, %v2230
    %v2232 = vrot.slane %v1934, %v2231
    %v2233 = vadd.f32 %v2227, %v2232
    %v2234 = vadd.f32 %v2228, %v2232
    %v2235 = vadd.f32 %v2233, %v1931
    %v2236 = vadd.f32 %v2234, %v1932
    %v2237 = vmax.f32 %v2235, 0.0
    %v2238 = vmax.f32 %v2236, 0.0
    %v2239 = vpack.c.bf16 %v2238, %v2237
    %v2240 = vld [vmem:[#allocation13] sm:$0xf]
    %v2241 = vld [vmem:[#allocation13 + $0x4] sm:$0xf]
    %v2242 = vld [vmem:[#allocation13 + $0x8] sm:$0xf]
    %v2243 = vld [vmem:[#allocation13 + $0xc] sm:$0xf]
    %v2244 = vld [vmem:[#allocation13 + $0x10] sm:$0xf]
    %v2245 = vld [vmem:[#allocation13 + $0x14] sm:$0xf]
    %v2246 = vld [vmem:[#allocation13 + $0x18] sm:$0xf]
    %v2247 = vld [vmem:[#allocation13 + $0x1c] sm:$0xf]
    %v2248 = vld [vmem:[#allocation13 + $0x20] sm:$0xf]
    %v2249 = vld [vmem:[#allocation13 + $0x24] sm:$0xf]
    %v2250 = vld [vmem:[#allocation13 + $0x28] sm:$0xf]
    %v2251 = vld [vmem:[#allocation13 + $0x2c] sm:$0xf]
    %v2252 = vld [vmem:[#allocation13 + $0x30] sm:$0xf]
    %v2253 = vld [vmem:[#allocation13 + $0x34] sm:$0xf]
    %v2254 = vld [vmem:[#allocation13 + $0x38] sm:$0xf]
    %v2255 = vld [vmem:[#allocation13 + $0x3c] sm:$0xf]
    %v2256 = vld [vmem:[%s7] sm:$0x1]
    %v2258 = vlaneseq
    %v2259 = vshrl.u32 %v2258, 7
    %v2260 = vsub.s32 0, %v2259
    %v2261 = vrot.slane %v2256, %v2260
    %v2279 = vunpack.c.l.b16 %v2240
    %v2280 = vunpack.c.l.b16 %v2241
    %v2281 = vunpack.c.l.b16 %v2242
    %v2282 = vunpack.c.l.b16 %v2243
    %v2283 = vunpack.c.l.b16 %v2244
    %v2284 = vunpack.c.l.b16 %v2245
    %v2285 = vunpack.c.l.b16 %v2246
    %v2286 = vunpack.c.l.b16 %v2247
    %v2287 = vunpack.c.l.b16 %v2248
    %v2288 = vunpack.c.l.b16 %v2249
    %v2289 = vunpack.c.l.b16 %v2250
    %v2290 = vunpack.c.l.b16 %v2251
    %v2291 = vunpack.c.l.b16 %v2252
    %v2292 = vunpack.c.l.b16 %v2253
    %v2293 = vunpack.c.l.b16 %v2254
    %v2294 = vunpack.c.l.b16 %v2255
    %v2295 = vpack.c.b16 %v2280, %v2279
    %v2296 = vpack.c.b16 %v2282, %v2281
    %v2297 = vpack.c.b16 %v2284, %v2283
    %v2298 = vpack.c.b16 %v2286, %v2285
    %v2299 = vpack.c.b16 %v2288, %v2287
    %v2300 = vpack.c.b16 %v2290, %v2289
    %v2301 = vpack.c.b16 %v2292, %v2291
    %v2302 = vpack.c.b16 %v2294, %v2293
    %2311 = vmatprep.subr.bf16.mxu0 0
    %2312 = vmatpush1.bf16.msra.mxu0 %v2302
    %2313 = vmatprep.subr.bf16.mxu0 0
    %2314 = vmatpush1.bf16.msra.mxu0 %v2301
    %2315 = vmatprep.subr.bf16.mxu0 0
    %2316 = vmatpush1.bf16.msra.mxu0 %v2300
    %2317 = vmatprep.subr.bf16.mxu0 0
    %2318 = vmatpush1.bf16.msra.mxu0 %v2299
    %2319 = vmatprep.subr.bf16.mxu0 0
    %2320 = vmatpush1.bf16.msra.mxu0 %v2298
    %2321 = vmatprep.subr.bf16.mxu0 0
    %2322 = vmatpush1.bf16.msra.mxu0 %v2297
    %2323 = vmatprep.subr.bf16.mxu0 0
    %2324 = vmatpush1.bf16.msra.mxu0 %v2296
    %2325 = vmatprep.subr.bf16.mxu0 0
    %2326 = vmatpush1.bf16.msra.mxu0 %v2295
    %2327 = vmatprep.subr.bf16.mxu0 0
    %2328 = vmatpush2.bf16.msra.mxu0 0
    %2329 = vmatprep.subr.bf16.mxu0 0
    %2330 = vmatpush2.bf16.msra.mxu0 0
    %2331 = vmatprep.subr.bf16.mxu0 0
    %2332 = vmatpush2.bf16.msra.mxu0 0
    %2333 = vmatprep.subr.bf16.mxu0 0
    %2334 = vmatpush2.bf16.msra.mxu0 0
    %2335 = vmatprep.subr.bf16.mxu0 0
    %2336 = vmatpush2.bf16.msra.mxu0 0
    %2337 = vmatprep.subr.bf16.mxu0 0
    %2338 = vmatpush2.bf16.msra.mxu0 0
    %2339 = vmatprep.subr.bf16.mxu0 0
    %2340 = vmatpush2.bf16.msra.mxu0 0
    %2341 = vmatprep.subr.bf16.mxu0 0
    %2342 = vmatpush2.bf16.msra.mxu0 0
    %2343 = vmatprep.mubr.bf16.mxu0 0
    %2344 = vmatmul.mubr.bf16.gmra.mxu0 %v2239
    %v2345 = vpop.f32.mrf.mxu0
    %v2346 = vadd.f32 %v2261, %v2345
    %v2347 = vpop.f32.mrf.mxu0
    %v2348 = vpop.f32.mrf.mxu0
    %v2349 = vadd.f32 %v2261, %v2348
    %v2350 = vpop.f32.mrf.mxu0
    %2351 = vdwg.mxu0
    %2352 = vst [vmem:[#allocation14] sm:$0xff] %v2346
    %2353 = vst [vmem:[#allocation14 + $0x8] sm:$0xff] %v2349
    // Predicated region
    $region62: #{tpu_custom_call.1} parent=1 // pred_check
      _
    $region63: #{tpu_custom_call.1} parent=1 // pred_check_branch
      %2355 = sbr.rel (0) target = $region65
    $region64: #{tpu_custom_call.1} parent=1 // pred_region
      %s2357 = ssub.s32 256, 256
      %2358 = vsyncadd [#allocation4], %s2357
      %s2359 = sshll.u32 [#allocation14], 4
      %s2360 = int_to_ptr.vmem [resolvable:$true] %s2359
      %2365 = dma.vmem_to_hbm [thread:$0]  %s2360, 256, %s8, [#allocation4], 128, 128, 8
    $region65: #{tpu_custom_call.1} parent=1 // pred_fallthru
      _
    // Predicated region
    $region66: #{tpu_custom_call.1} parent=1 // pred_check
      _
    $region67: #{tpu_custom_call.1} parent=1 // pred_check_branch
      %2367 = sbr.rel (0) target = $region69
    $region68: #{tpu_custom_call.1} parent=1 // pred_region
      %2368 = dma.done [#allocation4], 256
    $region69: #{tpu_custom_call.1} parent=1 // pred_fallthru
      _
    %2369 = vsyncpa [#allocation3], 1
    %2370 = vsyncpa [#allocation6], 1
    %2371 = vsyncpa [#allocation9], 1
    %2372 = vsyncpa [#allocation12], 1
    %2373 = vsyncpa [#allocation4], 1

</llo_original>
